<compile_context>
chip_gen: v7x
topology: tpu7x:2x2x1
jax: 0.10.0
libtpu: 0.0.40
codegen_flags: <defaults>
</compile_context>

<pallas_src>
import math
import functools

import jax
import jax.numpy as jnp
from jax import lax
from jax.experimental import pallas as pl
from jax.experimental.pallas import tpu as pltpu


def _mha_kernel(q_ref, k_ref, v_ref, mask_ref,
                wq_ref, bq_ref, wk_ref, bk_ref,
                wv_ref, bv_ref, wo_ref, bo_ref,
                out_ref, cat_ref, *, nhead, head_dim):
    """One (batch, S-tile) per grid step. All tiles live fully in VMEM.

    q_ref    (1, TS, D) bf16     k_ref/v_ref (1, L, D) bf16
    mask_ref (1, TS, L) bf16     w*_ref (D, D) bf16    b*_ref (1, D) f32
    out_ref  (1, TS, D) f32      cat_ref (TS, D) f32 VMEM scratch
    """
    f32, bf16 = jnp.float32, jnp.bfloat16

    q_in = q_ref[0]                      # (TS, D) bf16
    k_in = k_ref[0]                      # (L, D)  bf16
    v_in = v_ref[0]                      # (L, D)  bf16
    keep = mask_ref[0] != 0              # (TS, L) bool

    # Input projections: bf16 MXU matmuls, f32 accumulation, f32 bias.
    q = jnp.dot(q_in, wq_ref[...], preferred_element_type=f32) + bq_ref[...]
    k = jnp.dot(k_in, wk_ref[...], preferred_element_type=f32) + bk_ref[...]
    v = jnp.dot(v_in, wv_ref[...], preferred_element_type=f32) + bv_ref[...]

    # Fold 1/sqrt(head_dim) into q once instead of scaling per-head scores.
    q = q * (1.0 / math.sqrt(head_dim))

    # Split heads onto a leading batch axis (static slices; no per-head matmuls).
    def split_heads(x):
        return jnp.stack(
            [x[:, h * head_dim:(h + 1) * head_dim] for h in range(nhead)], axis=0)

    qh = split_heads(q).astype(bf16)     # (H, TS, hd)
    kh = split_heads(k).astype(bf16)     # (H, L,  hd)
    vh = split_heads(v).astype(bf16)     # (H, L,  hd)

    # Batched scores over heads: (H, TS, hd) x (H, L, hd) -> (H, TS, L), f32 acc.
    scores = lax.dot_general(
        qh, kh, (((2,), (2,)), ((0,), (0,))), preferred_element_type=f32)
    scores = jnp.where(keep[None, :, :], scores, -1.0e9)

    # Numerically stable softmax in f32; divide on the EUP via approx reciprocal.
    s_max = jnp.max(scores, axis=-1, keepdims=True)
    e = jnp.exp(scores - s_max)
    denom = jnp.sum(e, axis=-1, keepdims=True)
    attn = e * pl.reciprocal(denom, approx=True)

    # Batched context: (H, TS, L) x (H, L, hd) -> (H, TS, hd), f32 acc.
    ctx = lax.dot_general(
        attn.astype(bf16), vh, (((2,), (1,)), ((0,), (0,))),
        preferred_element_type=f32)

    # Merge heads into a lane-dense (TS, D) scratch via static column writes
    # (replaces the minor-dim concatenate).
    for h in range(nhead):
        cat_ref[:, h * head_dim:(h + 1) * head_dim] = ctx[h]

    # Output projection; single full-width store of the (TS, D) result.
    out = (jnp.dot(cat_ref[...].astype(bf16), wo_ref[...],
                   preferred_element_type=f32) + bo_ref[...])
    out_ref[0] = out.astype(out_ref.dtype)


def _pick_s_tile(s):
    """Largest convenient S tile; falls back to full S for small/odd sizes."""
    for t in (512, 256, 128):
        if s % t == 0:
            return t
    return s


def multi_head_attn(query, key, value, params, nhead, mask=None):
    """Pallas implementation of MultiHeadAttn.forward (eval mode)."""
    B, S, D = query.shape
    L = key.shape[1]
    head_dim = D // nhead
    assert nhead * head_dim == D

    bf16 = jnp.bfloat16
    if mask is None:
        mask = jnp.ones((B, S, L), dtype=bf16)
    else:
        mask = mask.astype(bf16)

    wq, bq, wk, bk, wv, bv, wo, bo = params
    # bf16 weights/activations feed the MXU; biases stay f32.
    q_bf, k_bf, v_bf = (x.astype(bf16) for x in (query, key, value))
    wq, wk, wv, wo = (w.astype(bf16) for w in (wq, wk, wv, wo))
    bq, bk, bv, bo = (b.astype(jnp.float32) for b in (bq, bk, bv, bo))

    ts = _pick_s_tile(S)
    n_s = S // ts

    kernel = functools.partial(_mha_kernel, nhead=nhead, head_dim=head_dim)

    w_spec = pl.BlockSpec((D, D), lambda b, s: (0, 0))     # grid-invariant weights
    b_spec = pl.BlockSpec((1, D), lambda b, s: (0, 0))
    kv_spec = pl.BlockSpec((1, L, D), lambda b, s: (b, 0, 0))

    return pl.pallas_call(
        kernel,
        out_shape=jax.ShapeDtypeStruct((B, S, D), jnp.float32),
        grid=(B, n_s),
        in_specs=[
            pl.BlockSpec((1, ts, D), lambda b, s: (b, s, 0)),   # query tile
            kv_spec,                                            # key (full L)
            kv_spec,                                            # value (full L)
            pl.BlockSpec((1, ts, L), lambda b, s: (b, s, 0)),   # mask tile
            w_spec, b_spec,                                     # Wq, bq
            w_spec, b_spec,                                     # Wk, bk
            w_spec, b_spec,                                     # Wv, bv
            w_spec, b_spec,                                     # Wo, bo
        ],
        out_specs=pl.BlockSpec((1, ts, D), lambda b, s: (b, s, 0)),
        scratch_shapes=[pltpu.VMEM((ts, D), jnp.float32)],      # head-concat scratch
        compiler_params=pltpu.CompilerParams(
            dimension_semantics=("parallel", "parallel"),
            vmem_limit_bytes=32 * 1024 * 1024),
    )(q_bf, k_bf, v_bf, mask, wq, bq, wk, bk, wv, bv, wo, bo)


def _reference_mha(query, key, value, params, nhead, mask=None):
    """Pure-JAX f32 reference matching the PyTorch module semantics."""
    B, S, D = query.shape
    L = key.shape[1]
    hd = D // nhead
    wq, bq, wk, bk, wv, bv, wo, bo = params

    def proj(x, w, b):
        return x @ w + b  # (B, T, D)

    q = proj(query, wq, bq).reshape(B, S, nhead, hd).transpose(0, 2, 1, 3)
    k = proj(key, wk, bk).reshape(B, L, nhead, hd).transpose(0, 2, 1, 3)
    v = proj(value, wv, bv).reshape(B, L, nhead, hd).transpose(0, 2, 1, 3)

    scores = jnp.einsum("bhsd,bhld->bhsl", q, k) / math.sqrt(hd)
    if mask is not None:
        scores = jnp.where(mask[:, None, :, :] == 0, -1.0e9, scores)
    scores = jax.nn.softmax(scores, axis=-1)
    out = jnp.einsum("bhsl,bhld->bhsd", scores, v)
    out = out.transpose(0, 2, 1, 3).reshape(B, S, D)
    return out @ wo + bo


def init_params(key, dim):
    """Deterministic Linear params (PyTorch-style uniform init), stored (in, out)."""
    bound = 1.0 / math.sqrt(dim)
    keys = jax.random.split(key, 8)
    params = []
    for i in range(4):
        w = jax.random.uniform(keys[2 * i], (dim, dim), jnp.float32, -bound, bound)
        b = jax.random.uniform(keys[2 * i + 1], (1, dim), jnp.float32, -bound, bound)
        params.extend([w, b])
    return tuple(params)


if __name__ == "__main__":
    B, S, L, D, NHEAD = 2, 8, 8, 32, 4

    root = jax.random.PRNGKey(0)
    k_q, k_k, k_v, k_m, k_p = jax.random.split(root, 5)

    query = jax.random.normal(k_q, (B, S, D), jnp.float32)
    key_t = jax.random.normal(k_k, (B, L, D), jnp.float32)
    value = jax.random.normal(k_v, (B, L, D), jnp.float32)
    # binary mask (B, S, L); 1 = attend, 0 = masked (matches masked_fill(mask==0, -1e9))
    mask = (jax.random.uniform(k_m, (B, S, L)) > 0.2).astype(jnp.float32)

    params = init_params(k_p, D)

    out = multi_head_attn(query, key_t, value, params, NHEAD, mask=mask)
    out = jax.block_until_ready(out)

    ref = _reference_mha(query, key_t, value, params, NHEAD, mask=mask)
    assert out.shape == (B, S, D)
    max_err = float(jnp.max(jnp.abs(out - ref)))
    # bf16 MXU inputs + approx reciprocal -> loosened tolerance vs the f32 reference.
    assert jnp.allclose(out, ref, atol=3e-2, rtol=3e-2), \
        f"mismatch vs. reference (max abs err {max_err})"

    print("KERNEL_OK")
</pallas_src>

<mosaic_0001>
module attributes {stable_mosaic.version = 11 : i64} {
  func.func @_mha_kernel(%arg0: i32, %arg1: i32, %arg2: memref<1x8x32xbf16, #tpu.memory_space<vmem>>, %arg3: memref<1x8x32xbf16, #tpu.memory_space<vmem>>, %arg4: memref<1x8x32xbf16, #tpu.memory_space<vmem>>, %arg5: memref<1x8x8xbf16, #tpu.memory_space<vmem>>, %arg6: memref<32x32xbf16, #tpu.memory_space<vmem>>, %arg7: memref<1x32xf32, #tpu.memory_space<vmem>>, %arg8: memref<32x32xbf16, #tpu.memory_space<vmem>>, %arg9: memref<1x32xf32, #tpu.memory_space<vmem>>, %arg10: memref<32x32xbf16, #tpu.memory_space<vmem>>, %arg11: memref<1x32xf32, #tpu.memory_space<vmem>>, %arg12: memref<32x32xbf16, #tpu.memory_space<vmem>>, %arg13: memref<1x32xf32, #tpu.memory_space<vmem>>, %arg14: memref<1x8x32xf32, #tpu.memory_space<vmem>>, %arg15: memref<8x32xf32, #tpu.memory_space<vmem>>) attributes {dimension_semantics = [#tpu.dimension_semantics<parallel>, #tpu.dimension_semantics<parallel>], iteration_bounds = array<i64: 2, 1>, scalar_prefetch = 0 : i64, scratch_operands = 1 : i64, tpu.core_type = #tpu.core_type<tc>, window_params = [{transform_indices = @transform_0, window_bounds = array<i64: 1, 8, 32>}, {transform_indices = @transform_1, window_bounds = array<i64: 1, 8, 32>}, {transform_indices = @transform_2, window_bounds = array<i64: 1, 8, 32>}, {transform_indices = @transform_3, window_bounds = array<i64: 1, 8, 8>}, {pipeline_mode = #tpu.pipeline_mode<synchronous>, transform_indices = @transform_4, window_bounds = array<i64: 32, 32>}, {pipeline_mode = #tpu.pipeline_mode<synchronous>, transform_indices = @transform_5, window_bounds = array<i64: 1, 32>}, {pipeline_mode = #tpu.pipeline_mode<synchronous>, transform_indices = @transform_6, window_bounds = array<i64: 32, 32>}, {pipeline_mode = #tpu.pipeline_mode<synchronous>, transform_indices = @transform_7, window_bounds = array<i64: 1, 32>}, {pipeline_mode = #tpu.pipeline_mode<synchronous>, transform_indices = @transform_8, window_bounds = array<i64: 32, 32>}, {pipeline_mode = #tpu.pipeline_mode<synchronous>, transform_indices = @transform_9, window_bounds = array<i64: 1, 32>}, {pipeline_mode = #tpu.pipeline_mode<synchronous>, transform_indices = @transform_10, window_bounds = array<i64: 32, 32>}, {pipeline_mode = #tpu.pipeline_mode<synchronous>, transform_indices = @transform_11, window_bounds = array<i64: 1, 32>}, {transform_indices = @transform_12, window_bounds = array<i64: 1, 8, 32>}]} {
    %c0 = arith.constant 0 : index
    %c0_0 = arith.constant 0 : index
    %c0_1 = arith.constant 0 : index
    %0 = vector.load %arg2[%c0, %c0_0, %c0_1] : memref<1x8x32xbf16, #tpu.memory_space<vmem>>, vector<1x8x32xbf16>
    %1 = vector.shape_cast %0 : vector<1x8x32xbf16> to vector<8x32xbf16>
    %c0_2 = arith.constant 0 : index
    %c0_3 = arith.constant 0 : index
    %c0_4 = arith.constant 0 : index
    %2 = vector.load %arg3[%c0_2, %c0_3, %c0_4] : memref<1x8x32xbf16, #tpu.memory_space<vmem>>, vector<1x8x32xbf16>
    %3 = vector.shape_cast %2 : vector<1x8x32xbf16> to vector<8x32xbf16>
    %c0_5 = arith.constant 0 : index
    %c0_6 = arith.constant 0 : index
    %c0_7 = arith.constant 0 : index
    %4 = vector.load %arg4[%c0_5, %c0_6, %c0_7] : memref<1x8x32xbf16, #tpu.memory_space<vmem>>, vector<1x8x32xbf16>
    %5 = vector.shape_cast %4 : vector<1x8x32xbf16> to vector<8x32xbf16>
    %c0_8 = arith.constant 0 : index
    %c0_9 = arith.constant 0 : index
    %c0_10 = arith.constant 0 : index
    %6 = vector.load %arg5[%c0_8, %c0_9, %c0_10] : memref<1x8x8xbf16, #tpu.memory_space<vmem>>, vector<1x8x8xbf16>
    %7 = vector.shape_cast %6 : vector<1x8x8xbf16> to vector<8x8xbf16>
    %cst = arith.constant 0.000000e+00 : bf16
    %8 = vector.broadcast %cst : bf16 to vector<8x8xbf16>
    %9 = arith.cmpf one, %7, %8 : vector<8x8xbf16>
    %c0_11 = arith.constant 0 : index
    %c0_12 = arith.constant 0 : index
    %10 = vector.load %arg6[%c0_11, %c0_12] : memref<32x32xbf16, #tpu.memory_space<vmem>>, vector<32x32xbf16>
    %cst_13 = arith.constant dense<0.000000e+00> : vector<8x32xf32>
    %11 = tpu.matmul %1, %10, %cst_13 {dimension_numbers = #tpu.dot_dimension_numbers<[1], [0], [0], [1], [0, 0, 1, 1], [], []>} : vector<8x32xbf16>, vector<32x32xbf16>, vector<8x32xf32> -> vector<8x32xf32>
    %c0_14 = arith.constant 0 : index
    %c0_15 = arith.constant 0 : index
    %12 = vector.load %arg7[%c0_14, %c0_15] : memref<1x32xf32, #tpu.memory_space<vmem>>, vector<1x32xf32>
    %13 = vector.broadcast %12 : vector<1x32xf32> to vector<8x32xf32>
    %14 = arith.addf %11, %13 : vector<8x32xf32>
    %c0_16 = arith.constant 0 : index
    %c0_17 = arith.constant 0 : index
    %15 = vector.load %arg8[%c0_16, %c0_17] : memref<32x32xbf16, #tpu.memory_space<vmem>>, vector<32x32xbf16>
    %cst_18 = arith.constant dense<0.000000e+00> : vector<8x32xf32>
    %16 = tpu.matmul %3, %15, %cst_18 {dimension_numbers = #tpu.dot_dimension_numbers<[1], [0], [0], [1], [0, 0, 1, 1], [], []>} : vector<8x32xbf16>, vector<32x32xbf16>, vector<8x32xf32> -> vector<8x32xf32>
    %c0_19 = arith.constant 0 : index
    %c0_20 = arith.constant 0 : index
    %17 = vector.load %arg9[%c0_19, %c0_20] : memref<1x32xf32, #tpu.memory_space<vmem>>, vector<1x32xf32>
    %18 = vector.broadcast %17 : vector<1x32xf32> to vector<8x32xf32>
    %19 = arith.addf %16, %18 : vector<8x32xf32>
    %c0_21 = arith.constant 0 : index
    %c0_22 = arith.constant 0 : index
    %20 = vector.load %arg10[%c0_21, %c0_22] : memref<32x32xbf16, #tpu.memory_space<vmem>>, vector<32x32xbf16>
    %cst_23 = arith.constant dense<0.000000e+00> : vector<8x32xf32>
    %21 = tpu.matmul %5, %20, %cst_23 {dimension_numbers = #tpu.dot_dimension_numbers<[1], [0], [0], [1], [0, 0, 1, 1], [], []>} : vector<8x32xbf16>, vector<32x32xbf16>, vector<8x32xf32> -> vector<8x32xf32>
    %c0_24 = arith.constant 0 : index
    %c0_25 = arith.constant 0 : index
    %22 = vector.load %arg11[%c0_24, %c0_25] : memref<1x32xf32, #tpu.memory_space<vmem>>, vector<1x32xf32>
    %23 = vector.broadcast %22 : vector<1x32xf32> to vector<8x32xf32>
    %24 = arith.addf %21, %23 : vector<8x32xf32>
    %cst_26 = arith.constant 0.353553385 : f32
    %25 = vector.broadcast %cst_26 : f32 to vector<8x32xf32>
    %26 = arith.mulf %14, %25 : vector<8x32xf32>
    %27 = vector.extract_strided_slice %26 {offsets = [0, 0], sizes = [8, 8], strides = [1, 1]} : vector<8x32xf32> to vector<8x8xf32>
    %28 = vector.extract_strided_slice %26 {offsets = [0, 8], sizes = [8, 8], strides = [1, 1]} : vector<8x32xf32> to vector<8x8xf32>
    %29 = vector.extract_strided_slice %26 {offsets = [0, 16], sizes = [8, 8], strides = [1, 1]} : vector<8x32xf32> to vector<8x8xf32>
    %30 = vector.extract_strided_slice %26 {offsets = [0, 24], sizes = [8, 8], strides = [1, 1]} : vector<8x32xf32> to vector<8x8xf32>
    %31 = vector.shape_cast %27 : vector<8x8xf32> to vector<1x8x8xf32>
    %32 = vector.shape_cast %28 : vector<8x8xf32> to vector<1x8x8xf32>
    %33 = vector.shape_cast %29 : vector<8x8xf32> to vector<1x8x8xf32>
    %34 = vector.shape_cast %30 : vector<8x8xf32> to vector<1x8x8xf32>
    %35 = tpu.concatenate %31, %32, %33, %34 in 0 : vector<1x8x8xf32>, vector<1x8x8xf32>, vector<1x8x8xf32>, vector<1x8x8xf32> -> vector<4x8x8xf32>
    %36 = arith.truncf %35 : vector<4x8x8xf32> to vector<4x8x8xbf16>
    %37 = vector.extract_strided_slice %19 {offsets = [0, 0], sizes = [8, 8], strides = [1, 1]} : vector<8x32xf32> to vector<8x8xf32>
    %38 = vector.extract_strided_slice %19 {offsets = [0, 8], sizes = [8, 8], strides = [1, 1]} : vector<8x32xf32> to vector<8x8xf32>
    %39 = vector.extract_strided_slice %19 {offsets = [0, 16], sizes = [8, 8], strides = [1, 1]} : vector<8x32xf32> to vector<8x8xf32>
    %40 = vector.extract_strided_slice %19 {offsets = [0, 24], sizes = [8, 8], strides = [1, 1]} : vector<8x32xf32> to vector<8x8xf32>
    %41 = vector.shape_cast %37 : vector<8x8xf32> to vector<1x8x8xf32>
    %42 = vector.shape_cast %38 : vector<8x8xf32> to vector<1x8x8xf32>
    %43 = vector.shape_cast %39 : vector<8x8xf32> to vector<1x8x8xf32>
    %44 = vector.shape_cast %40 : vector<8x8xf32> to vector<1x8x8xf32>
    %45 = tpu.concatenate %41, %42, %43, %44 in 0 : vector<1x8x8xf32>, vector<1x8x8xf32>, vector<1x8x8xf32>, vector<1x8x8xf32> -> vector<4x8x8xf32>
    %46 = arith.truncf %45 : vector<4x8x8xf32> to vector<4x8x8xbf16>
    %47 = vector.extract_strided_slice %24 {offsets = [0, 0], sizes = [8, 8], strides = [1, 1]} : vector<8x32xf32> to vector<8x8xf32>
    %48 = vector.extract_strided_slice %24 {offsets = [0, 8], sizes = [8, 8], strides = [1, 1]} : vector<8x32xf32> to vector<8x8xf32>
    %49 = vector.extract_strided_slice %24 {offsets = [0, 16], sizes = [8, 8], strides = [1, 1]} : vector<8x32xf32> to vector<8x8xf32>
    %50 = vector.extract_strided_slice %24 {offsets = [0, 24], sizes = [8, 8], strides = [1, 1]} : vector<8x32xf32> to vector<8x8xf32>
    %51 = vector.shape_cast %47 : vector<8x8xf32> to vector<1x8x8xf32>
    %52 = vector.shape_cast %48 : vector<8x8xf32> to vector<1x8x8xf32>
    %53 = vector.shape_cast %49 : vector<8x8xf32> to vector<1x8x8xf32>
    %54 = vector.shape_cast %50 : vector<8x8xf32> to vector<1x8x8xf32>
    %55 = tpu.concatenate %51, %52, %53, %54 in 0 : vector<1x8x8xf32>, vector<1x8x8xf32>, vector<1x8x8xf32>, vector<1x8x8xf32> -> vector<4x8x8xf32>
    %56 = arith.truncf %55 : vector<4x8x8xf32> to vector<4x8x8xbf16>
    %cst_27 = arith.constant dense<0.000000e+00> : vector<4x8x8xf32>
    %57 = tpu.matmul %36, %46, %cst_27 {dimension_numbers = #tpu.dot_dimension_numbers<[2], [2], [1], [1], [0, 0, 0, 1, 1, 1], [0], [0]>} : vector<4x8x8xbf16>, vector<4x8x8xbf16>, vector<4x8x8xf32> -> vector<4x8x8xf32>
    %58 = vector.shape_cast %9 : vector<8x8xi1> to vector<1x8x8xi1>
    %cst_28 = arith.constant -1.000000e+09 : f32
    %59 = vector.shape_cast %58 : vector<1x8x8xi1> to vector<1x8x8xi1>
    %60 = vector.broadcast %59 : vector<1x8x8xi1> to vector<4x8x8xi1>
    %61 = vector.broadcast %cst_28 : f32 to vector<4x8x8xf32>
    %62 = arith.select %60, %57, %61 : vector<4x8x8xi1>, vector<4x8x8xf32>
    %cst_29 = arith.constant dense<0xFF800000> : vector<4x8xf32>
    %63 = vector.multi_reduction <maximumf>, %62, %cst_29 [2] : vector<4x8x8xf32> to vector<4x8xf32>
    %64 = vector.shape_cast %63 : vector<4x8xf32> to vector<4x8x1xf32>
    %65 = vector.broadcast %64 : vector<4x8x1xf32> to vector<4x8x8xf32>
    %66 = arith.subf %62, %65 : vector<4x8x8xf32>
    %67 = math.exp %66 : vector<4x8x8xf32>
    %cst_30 = arith.constant dense<0.000000e+00> : vector<4x8xf32>
    %68 = vector.multi_reduction <add>, %67, %cst_30 [2] : vector<4x8x8xf32> to vector<4x8xf32>
    %69 = vector.shape_cast %68 : vector<4x8xf32> to vector<4x8x1xf32>
    %70 = tpu.reciprocal %69 {approx = true} : vector<4x8x1xf32> -> vector<4x8x1xf32>
    %71 = vector.broadcast %70 : vector<4x8x1xf32> to vector<4x8x8xf32>
    %72 = arith.mulf %67, %71 : vector<4x8x8xf32>
    %73 = arith.truncf %72 : vector<4x8x8xf32> to vector<4x8x8xbf16>
    %cst_31 = arith.constant dense<0.000000e+00> : vector<4x8x8xf32>
    %74 = tpu.matmul %73, %56, %cst_31 {dimension_numbers = #tpu.dot_dimension_numbers<[2], [1], [1], [2], [0, 0, 0, 1, 1, 2], [0], [0]>} : vector<4x8x8xbf16>, vector<4x8x8xbf16>, vector<4x8x8xf32> -> vector<4x8x8xf32>
    %75 = vector.extract_strided_slice %74 {offsets = [0, 0, 0], sizes = [1, 8, 8], strides = [1, 1, 1]} : vector<4x8x8xf32> to vector<1x8x8xf32>
    %76 = vector.shape_cast %75 : vector<1x8x8xf32> to vector<8x8xf32>
    %c0_32 = arith.constant 0 : index
    %c0_33 = arith.constant 0 : index
    %77 = vector.load %arg15[%c0_32, %c0_33] : memref<8x32xf32, #tpu.memory_space<vmem>>, vector<8x8xf32>
    tpu.vector_store %arg15[%c0_32, %c0_33], %76 {strides = array<i32>} : memref<8x32xf32, #tpu.memory_space<vmem>>, vector<8x8xf32>,
    %78 = vector.extract_strided_slice %74 {offsets = [1, 0, 0], sizes = [1, 8, 8], strides = [1, 1, 1]} : vector<4x8x8xf32> to vector<1x8x8xf32>
    %79 = vector.shape_cast %78 : vector<1x8x8xf32> to vector<8x8xf32>
    %c0_34 = arith.constant 0 : index
    %c8 = arith.constant 8 : index
    %80 = vector.load %arg15[%c0_34, %c8] : memref<8x32xf32, #tpu.memory_space<vmem>>, vector<8x8xf32>
    tpu.vector_store %arg15[%c0_34, %c8], %79 {strides = array<i32>} : memref<8x32xf32, #tpu.memory_space<vmem>>, vector<8x8xf32>,
    %81 = vector.extract_strided_slice %74 {offsets = [2, 0, 0], sizes = [1, 8, 8], strides = [1, 1, 1]} : vector<4x8x8xf32> to vector<1x8x8xf32>
    %82 = vector.shape_cast %81 : vector<1x8x8xf32> to vector<8x8xf32>
    %c0_35 = arith.constant 0 : index
    %c16 = arith.constant 16 : index
    %83 = vector.load %arg15[%c0_35, %c16] : memref<8x32xf32, #tpu.memory_space<vmem>>, vector<8x8xf32>
    tpu.vector_store %arg15[%c0_35, %c16], %82 {strides = array<i32>} : memref<8x32xf32, #tpu.memory_space<vmem>>, vector<8x8xf32>,
    %84 = vector.extract_strided_slice %74 {offsets = [3, 0, 0], sizes = [1, 8, 8], strides = [1, 1, 1]} : vector<4x8x8xf32> to vector<1x8x8xf32>
    %85 = vector.shape_cast %84 : vector<1x8x8xf32> to vector<8x8xf32>
    %c0_36 = arith.constant 0 : index
    %c24 = arith.constant 24 : index
    %86 = vector.load %arg15[%c0_36, %c24] : memref<8x32xf32, #tpu.memory_space<vmem>>, vector<8x8xf32>
    tpu.vector_store %arg15[%c0_36, %c24], %85 {strides = array<i32>} : memref<8x32xf32, #tpu.memory_space<vmem>>, vector<8x8xf32>,
    %c0_37 = arith.constant 0 : index
    %c0_38 = arith.constant 0 : index
    %87 = vector.load %arg15[%c0_37, %c0_38] : memref<8x32xf32, #tpu.memory_space<vmem>>, vector<8x32xf32>
    %88 = arith.truncf %87 : vector<8x32xf32> to vector<8x32xbf16>
    %c0_39 = arith.constant 0 : index
    %c0_40 = arith.constant 0 : index
    %89 = vector.load %arg12[%c0_39, %c0_40] : memref<32x32xbf16, #tpu.memory_space<vmem>>, vector<32x32xbf16>
    %cst_41 = arith.constant dense<0.000000e+00> : vector<8x32xf32>
    %90 = tpu.matmul %88, %89, %cst_41 {dimension_numbers = #tpu.dot_dimension_numbers<[1], [0], [0], [1], [0, 0, 1, 1], [], []>} : vector<8x32xbf16>, vector<32x32xbf16>, vector<8x32xf32> -> vector<8x32xf32>
    %c0_42 = arith.constant 0 : index
    %c0_43 = arith.constant 0 : index
    %91 = vector.load %arg13[%c0_42, %c0_43] : memref<1x32xf32, #tpu.memory_space<vmem>>, vector<1x32xf32>
    %92 = vector.broadcast %91 : vector<1x32xf32> to vector<8x32xf32>
    %93 = arith.addf %90, %92 : vector<8x32xf32>
    %c0_44 = arith.constant 0 : index
    %c0_45 = arith.constant 0 : index
    %c0_46 = arith.constant 0 : index
    %94 = vector.load %arg14[%c0_44, %c0_45, %c0_46] : memref<1x8x32xf32, #tpu.memory_space<vmem>>, vector<1x8x32xf32>
    %95 = vector.shape_cast %94 : vector<1x8x32xf32> to vector<8x32xf32>
    %96 = vector.shape_cast %93 : vector<8x32xf32> to vector<1x8x32xf32>
    tpu.vector_store %arg14[%c0_44, %c0_45, %c0_46], %96 {strides = array<i32>} : memref<1x8x32xf32, #tpu.memory_space<vmem>>, vector<1x8x32xf32>,
    return
  }
  func.func @transform_0(%arg0: i32, %arg1: i32) -> (i32, i32, i32) {
    %c0_i32 = arith.constant 0 : i32
    %c0_i32_0 = arith.constant 0 : i32
    return %arg0, %arg1, %c0_i32 : i32, i32, i32
  }
  func.func @transform_1(%arg0: i32, %arg1: i32) -> (i32, i32, i32) {
    %c0_i32 = arith.constant 0 : i32
    %c0_i32_0 = arith.constant 0 : i32
    %c0_i32_1 = arith.constant 0 : i32
    return %arg0, %c0_i32, %c0_i32_0 : i32, i32, i32
  }
  func.func @transform_2(%arg0: i32, %arg1: i32) -> (i32, i32, i32) {
    %c0_i32 = arith.constant 0 : i32
    %c0_i32_0 = arith.constant 0 : i32
    %c0_i32_1 = arith.constant 0 : i32
    return %arg0, %c0_i32, %c0_i32_0 : i32, i32, i32
  }
  func.func @transform_3(%arg0: i32, %arg1: i32) -> (i32, i32, i32) {
    %c0_i32 = arith.constant 0 : i32
    %c0_i32_0 = arith.constant 0 : i32
    return %arg0, %arg1, %c0_i32 : i32, i32, i32
  }
  func.func @transform_4(%arg0: i32, %arg1: i32) -> (i32, i32) {
    %c0_i32 = arith.constant 0 : i32
    %c0_i32_0 = arith.constant 0 : i32
    %c0_i32_1 = arith.constant 0 : i32
    return %c0_i32, %c0_i32_0 : i32, i32
  }
  func.func @transform_5(%arg0: i32, %arg1: i32) -> (i32, i32) {
    %c0_i32 = arith.constant 0 : i32
    %c0_i32_0 = arith.constant 0 : i32
    %c0_i32_1 = arith.constant 0 : i32
    return %c0_i32, %c0_i32_0 : i32, i32
  }
  func.func @transform_6(%arg0: i32, %arg1: i32) -> (i32, i32) {
    %c0_i32 = arith.constant 0 : i32
    %c0_i32_0 = arith.constant 0 : i32
    %c0_i32_1 = arith.constant 0 : i32
    return %c0_i32, %c0_i32_0 : i32, i32
  }
  func.func @transform_7(%arg0: i32, %arg1: i32) -> (i32, i32) {
    %c0_i32 = arith.constant 0 : i32
    %c0_i32_0 = arith.constant 0 : i32
    %c0_i32_1 = arith.constant 0 : i32
    return %c0_i32, %c0_i32_0 : i32, i32
  }
  func.func @transform_8(%arg0: i32, %arg1: i32) -> (i32, i32) {
    %c0_i32 = arith.constant 0 : i32
    %c0_i32_0 = arith.constant 0 : i32
    %c0_i32_1 = arith.constant 0 : i32
    return %c0_i32, %c0_i32_0 : i32, i32
  }
  func.func @transform_9(%arg0: i32, %arg1: i32) -> (i32, i32) {
    %c0_i32 = arith.constant 0 : i32
    %c0_i32_0 = arith.constant 0 : i32
    %c0_i32_1 = arith.constant 0 : i32
    return %c0_i32, %c0_i32_0 : i32, i32
  }
  func.func @transform_10(%arg0: i32, %arg1: i32) -> (i32, i32) {
    %c0_i32 = arith.constant 0 : i32
    %c0_i32_0 = arith.constant 0 : i32
    %c0_i32_1 = arith.constant 0 : i32
    return %c0_i32, %c0_i32_0 : i32, i32
  }
  func.func @transform_11(%arg0: i32, %arg1: i32) -> (i32, i32) {
    %c0_i32 = arith.constant 0 : i32
    %c0_i32_0 = arith.constant 0 : i32
    %c0_i32_1 = arith.constant 0 : i32
    return %c0_i32, %c0_i32_0 : i32, i32
  }
  func.func @transform_12(%arg0: i32, %arg1: i32) -> (i32, i32, i32) {
    %c0_i32 = arith.constant 0 : i32
    %c0_i32_0 = arith.constant 0 : i32
    return %arg0, %arg1, %c0_i32 : i32, i32, i32
  }
}

</mosaic_0001>

<llo_original>
// kernel: tpu_custom_call.1
$region0: #{tpu_custom_call.1}
  #allocation0 [shape = 'u32[]', space=smem, size = 0x4, offset = 0x4, fixed_abs, tag = 'smem constant byte address 0x4 - core index']
  #allocation1 [shape = 'u32[144,128]{1,0:T(1,128)}', space=vmem, size = 0x12000, scoped, tag = 'internal scratch']
  #allocation2 [shape = 'f32[8,32]{1,0:T(8,128)}', space=vmem, size = 0x1000, scoped, tag = 'scratch operand']
  %s0 = inlined_call_operand.hbm [shape: bf16[2,8,32], index: 0, kind: input, shape index: {}]
  %s1 = inlined_call_operand.hbm [shape: bf16[2,8,32], index: 1, kind: input, shape index: {}]
  %s2 = inlined_call_operand.hbm [shape: bf16[2,8,32], index: 2, kind: input, shape index: {}]
  %s3 = inlined_call_operand.hbm [shape: bf16[2,8,8], index: 3, kind: input, shape index: {}]
  %s4 = inlined_call_operand.hbm [shape: bf16[32,32], index: 4, kind: input, shape index: {}]
  %s5 = inlined_call_operand.vmem [shape: f32[1,32], index: 5, kind: input, shape index: {}]
  %s6 = inlined_call_operand.vmem [shape: bf16[32,32], index: 6, kind: input, shape index: {}]
  %s7 = inlined_call_operand.vmem [shape: f32[1,32], index: 7, kind: input, shape index: {}]
  %s8 = inlined_call_operand.hbm [shape: bf16[32,32], index: 8, kind: input, shape index: {}]
  %s9 = inlined_call_operand.hbm [shape: f32[1,32], index: 9, kind: input, shape index: {}]
  %s10 = inlined_call_operand.vmem [shape: bf16[32,32], index: 10, kind: input, shape index: {}]
  %s11 = inlined_call_operand.vmem [shape: f32[1,32], index: 11, kind: input, shape index: {}]
  %s12 = inlined_call_operand.hbm [shape: f32[2,8,32], index: 12, kind: output, shape index: {}]
  %s13 = sld [smem:[#allocation0]]
  $region109: #{tpu_custom_call.1} parent=0
    _
  %s15 = ssub.s32 1, %s13
  %s16 = scalar_select 0, %s15, %s13
  $region1: #{tpu_custom_call.1} parent=0
    #allocation3 [shape = 'u8[4096]{0}', space=vmem, size = 0x1000, scoped, tag = 'input window, operand 0']
    #allocation4 [shape = 's32[2]{0}', space=sflag, size = 0x8, scoped, tag = 'scoped memory for tpu_custom_call.1']
    #allocation5 [shape = 's32[2]{0}', space=sflag, size = 0x8, scoped, tag = 'scoped memory for tpu_custom_call.1']
    #allocation6 [shape = 'u8[4096]{0}', space=vmem, size = 0x1000, scoped, tag = 'input window, operand 1']
    #allocation7 [shape = 's32[2]{0}', space=sflag, size = 0x8, scoped, tag = 'scoped memory for tpu_custom_call.1']
    #allocation8 [shape = 'u8[4096]{0}', space=vmem, size = 0x1000, scoped, tag = 'input window, operand 2']
    #allocation9 [shape = 'u8[4096]{0}', space=vmem, size = 0x1000, scoped, tag = 'input window, operand 3']
    #allocation10 [shape = 's32[2]{0}', space=sflag, size = 0x8, scoped, tag = 'scoped memory for tpu_custom_call.1']
    #allocation11 [shape = 'u8[8192]{0}', space=vmem, size = 0x2000, scoped, tag = 'input window, operand 4, single buffered']
    #allocation12 [shape = 'u8[8192]{0}', space=vmem, size = 0x2000, scoped, tag = 'input window, operand 8, single buffered']
    #allocation13 [shape = 's32[1]{0}', space=sflag, size = 0x4, scoped, tag = 'scoped memory for tpu_custom_call.1']
    #allocation14 [shape = 'u8[512]{0}', space=vmem, size = 0x400, scoped, tag = 'input window, operand 9, single buffered']
    #allocation15 [shape = 'u8[8192]{0}', space=vmem, size = 0x2000, scoped, tag = 'output window, operand 0']
    %17 = vsyncpa [#allocation4], 0
    %s18 = scalar_lea.sflag [#allocation4], 1
    %19 = vsyncpa %s18, 0
    %20 = vsyncpa [#allocation7], 0
    %s21 = scalar_lea.sflag [#allocation7], 1
    %22 = vsyncpa %s21, 0
    %23 = vsyncpa [#allocation10], 0
    %s24 = scalar_lea.sflag [#allocation10], 1
    %25 = vsyncpa %s24, 0
    %26 = vsyncpa [#allocation13], 0
    %27 = vsyncpa [#allocation5], 0
    %s28 = scalar_lea.sflag [#allocation5], 1
    %29 = vsyncpa %s28, 0
    loop: start=0, step=1, limit=4
    $region2: #{tpu_custom_call.1} parent=1 // loop_pre_header
      _
    $region3: #{tpu_custom_call.1} parent=1 // loop_header
      %s31 = sphi 0, %s35
      %p32 = scmp.ge.s32.totalorder %s31, 4
      %s38 = sphi 0, %s50
      %s39 = sphi 0, %s46
      %s40 = sphi 0, %s38
      %s41 = sphi 0, %s39
      %s42 = sphi 0, %s40
      %s43 = sphi 0, %s41
      %s55 = sphi 0, %s57
      %s58 = sphi 0, %s55
      %s59 = sphi 0, %s58
      %s75 = sphi 0, %s59
      %s81 = sphi 0, %s83
      %s84 = sphi 0, %s81
      %s85 = sphi 0, %s84
      %s101 = sphi 0, %s85
      %s107 = sphi 0, %s109
      %s110 = sphi 0, %s107
      %s111 = sphi 0, %s110
      %s127 = sphi 0, %s111
      %s135 = sphi 0, %s137
      %s138 = sphi 0, %s135
      %s139 = sphi 0, %s138
      %s155 = sphi 0, %s139
      %s159 = sphi 0, %s159
      %s161 = sphi 0, %s159
      %s162 = sphi 0, %s161
      %s176 = sphi 0, %s162
      %s180 = sphi 0, %s180
      %s182 = sphi 0, %s180
      %s183 = sphi 0, %s182
      %s197 = sphi 0, %s183
      %s201 = sphi 0, %s201
      %s203 = sphi 0, %s201
      %s204 = sphi 0, %s203
      %s218 = sphi 0, %s204
      %s222 = sphi 0, %s222
      %s224 = sphi 0, %s222
      %s225 = sphi 0, %s224
      %s239 = sphi 0, %s225
      %s243 = sphi 0, %s243
      %s245 = sphi 0, %s243
      %s246 = sphi 0, %s245
      %s260 = sphi 0, %s246
      %s264 = sphi 0, %s264
      %s266 = sphi 0, %s264
      %s267 = sphi 0, %s266
      %s281 = sphi 0, %s267
      %s285 = sphi 0, %s285
      %s287 = sphi 0, %s285
      %s288 = sphi 0, %s287
      %s302 = sphi 0, %s288
      %s306 = sphi 0, %s306
      %s308 = sphi 0, %s306
      %s309 = sphi 0, %s308
      %s323 = sphi 0, %s309
      %s331 = sphi 0, %s333
      %s334 = sphi 0, %s331
      %s335 = sphi 0, %s334
      %s351 = sphi 0, %s335
    $region4: #{tpu_custom_call.1} parent=1 // loop_header_branch
      %34 = sbr.rel (%p32) target = $region8
    $region5: #{tpu_custom_call.1} parent=1 // loop_body
      %s36 = ssub.s32 %s31, 1
      %s37 = ssub.s32 %s31, 2
      %s44 = sadd.s32 1, %s39
      %p45 = scmp.ge.s32.totalorder %s44, 1
      %s46 = scalar_select %p45, 0, %s44
      %s47 = sadd.s32 1, %s38
      %s48 = scalar_select %p45, %s47, %s38
      %p49 = scmp.ge.s32.totalorder %s48, 2
      %s50 = scalar_select %p49, 0, %s48
      %s51 = ssub.s32 %s38, %s50
      %s52 = ssub.s32 %s39, %s46
      %s53 = sor.u32 %s51, %s52
      %p54 = scmp.eq.s32.totalorder %s53, 0
      %s56 = sadd.s32 %s55, 1
      %s57 = scalar_select %p54, %s55, %s56
      %p60 = pneg %p54
      %p61 = scmp.eq.s32.totalorder %s31, 1
      %p62 = por %p60, %p61
      %p63 = scmp.ne.s32.totalorder %s55, %s58
      %p64 = scmp.eq.s32.totalorder %s31, 0
      %p65 = por %p63, %p64
      %p66 = scmp.ne.s32.totalorder %s55, %s58
      %p67 = scmp.eq.s32.totalorder %s36, 1
      %p68 = por %p66, %p67
      %p69 = scmp.ne.s32.totalorder %s58, %s59
      %p70 = scmp.eq.s32.totalorder %s36, 0
      %p71 = por %p69, %p70
      %p72 = scmp.ne.s32.totalorder %s58, %s59
      %p73 = scmp.eq.s32.totalorder %s37, 1
      %p74 = por %p72, %p73
      %p76 = scmp.ne.s32.totalorder %s59, %s75
      %p77 = scmp.eq.s32.totalorder %s37, 0
      %p78 = por %p76, %p77
      %s79 = ssub.s32 %s38, %s50
      %p80 = scmp.eq.s32.totalorder %s79, 0
      %s82 = sadd.s32 %s81, 1
      %s83 = scalar_select %p80, %s81, %s82
      %p86 = pneg %p80
      %p87 = scmp.eq.s32.totalorder %s31, 1
      %p88 = por %p86, %p87
      %p89 = scmp.ne.s32.totalorder %s81, %s84
      %p90 = scmp.eq.s32.totalorder %s31, 0
      %p91 = por %p89, %p90
      %p92 = scmp.ne.s32.totalorder %s81, %s84
      %p93 = scmp.eq.s32.totalorder %s36, 1
      %p94 = por %p92, %p93
      %p95 = scmp.ne.s32.totalorder %s84, %s85
      %p96 = scmp.eq.s32.totalorder %s36, 0
      %p97 = por %p95, %p96
      %p98 = scmp.ne.s32.totalorder %s84, %s85
      %p99 = scmp.eq.s32.totalorder %s37, 1
      %p100 = por %p98, %p99
      %p102 = scmp.ne.s32.totalorder %s85, %s101
      %p103 = scmp.eq.s32.totalorder %s37, 0
      %p104 = por %p102, %p103
      %s105 = ssub.s32 %s38, %s50
      %p106 = scmp.eq.s32.totalorder %s105, 0
      %s108 = sadd.s32 %s107, 1
      %s109 = scalar_select %p106, %s107, %s108
      %p112 = pneg %p106
      %p113 = scmp.eq.s32.totalorder %s31, 1
      %p114 = por %p112, %p113
      %p115 = scmp.ne.s32.totalorder %s107, %s110
      %p116 = scmp.eq.s32.totalorder %s31, 0
      %p117 = por %p115, %p116
      %p118 = scmp.ne.s32.totalorder %s107, %s110
      %p119 = scmp.eq.s32.totalorder %s36, 1
      %p120 = por %p118, %p119
      %p121 = scmp.ne.s32.totalorder %s110, %s111
      %p122 = scmp.eq.s32.totalorder %s36, 0
      %p123 = por %p121, %p122
      %p124 = scmp.ne.s32.totalorder %s110, %s111
      %p125 = scmp.eq.s32.totalorder %s37, 1
      %p126 = por %p124, %p125
      %p128 = scmp.ne.s32.totalorder %s111, %s127
      %p129 = scmp.eq.s32.totalorder %s37, 0
      %p130 = por %p128, %p129
      %s131 = ssub.s32 %s38, %s50
      %s132 = ssub.s32 %s39, %s46
      %s133 = sor.u32 %s131, %s132
      %p134 = scmp.eq.s32.totalorder %s133, 0
      %s136 = sadd.s32 %s135, 1
      %s137 = scalar_select %p134, %s135, %s136
      %p140 = pneg %p134
      %p141 = scmp.eq.s32.totalorder %s31, 1
      %p142 = por %p140, %p141
      %p143 = scmp.ne.s32.totalorder %s135, %s138
      %p144 = scmp.eq.s32.totalorder %s31, 0
      %p145 = por %p143, %p144
      %p146 = scmp.ne.s32.totalorder %s135, %s138
      %p147 = scmp.eq.s32.totalorder %s36, 1
      %p148 = por %p146, %p147
      %p149 = scmp.ne.s32.totalorder %s138, %s139
      %p150 = scmp.eq.s32.totalorder %s36, 0
      %p151 = por %p149, %p150
      %p152 = scmp.ne.s32.totalorder %s138, %s139
      %p153 = scmp.eq.s32.totalorder %s37, 1
      %p154 = por %p152, %p153
      %p156 = scmp.ne.s32.totalorder %s139, %s155
      %p157 = scmp.eq.s32.totalorder %s37, 0
      %p158 = por %p156, %p157
      %s160 = sadd.s32 %s159, 1
      %p163 = scmp.eq.s32.totalorder %s31, 1
      %p164 = scmp.ne.s32.totalorder %s159, %s161
      %p165 = scmp.eq.s32.totalorder %s31, 0
      %p166 = por %p164, %p165
      %p167 = scmp.ne.s32.totalorder %s159, %s161
      %p168 = scmp.eq.s32.totalorder %s36, 1
      %p169 = por %p167, %p168
      %p170 = scmp.ne.s32.totalorder %s161, %s162
      %p171 = scmp.eq.s32.totalorder %s36, 0
      %p172 = por %p170, %p171
      %p173 = scmp.ne.s32.totalorder %s161, %s162
      %p174 = scmp.eq.s32.totalorder %s37, 1
      %p175 = por %p173, %p174
      %p177 = scmp.ne.s32.totalorder %s162, %s176
      %p178 = scmp.eq.s32.totalorder %s37, 0
      %p179 = por %p177, %p178
      %s181 = sadd.s32 %s180, 1
      %p184 = scmp.eq.s32.totalorder %s31, 1
      %p185 = scmp.ne.s32.totalorder %s180, %s182
      %p186 = scmp.eq.s32.totalorder %s31, 0
      %p187 = por %p185, %p186
      %p188 = scmp.ne.s32.totalorder %s180, %s182
      %p189 = scmp.eq.s32.totalorder %s36, 1
      %p190 = por %p188, %p189
      %p191 = scmp.ne.s32.totalorder %s182, %s183
      %p192 = scmp.eq.s32.totalorder %s36, 0
      %p193 = por %p191, %p192
      %p194 = scmp.ne.s32.totalorder %s182, %s183
      %p195 = scmp.eq.s32.totalorder %s37, 1
      %p196 = por %p194, %p195
      %p198 = scmp.ne.s32.totalorder %s183, %s197
      %p199 = scmp.eq.s32.totalorder %s37, 0
      %p200 = por %p198, %p199
      %s202 = sadd.s32 %s201, 1
      %p205 = scmp.eq.s32.totalorder %s31, 1
      %p206 = scmp.ne.s32.totalorder %s201, %s203
      %p207 = scmp.eq.s32.totalorder %s31, 0
      %p208 = por %p206, %p207
      %p209 = scmp.ne.s32.totalorder %s201, %s203
      %p210 = scmp.eq.s32.totalorder %s36, 1
      %p211 = por %p209, %p210
      %p212 = scmp.ne.s32.totalorder %s203, %s204
      %p213 = scmp.eq.s32.totalorder %s36, 0
      %p214 = por %p212, %p213
      %p215 = scmp.ne.s32.totalorder %s203, %s204
      %p216 = scmp.eq.s32.totalorder %s37, 1
      %p217 = por %p215, %p216
      %p219 = scmp.ne.s32.totalorder %s204, %s218
      %p220 = scmp.eq.s32.totalorder %s37, 0
      %p221 = por %p219, %p220
      %s223 = sadd.s32 %s222, 1
      %p226 = scmp.eq.s32.totalorder %s31, 1
      %p227 = scmp.ne.s32.totalorder %s222, %s224
      %p228 = scmp.eq.s32.totalorder %s31, 0
      %p229 = por %p227, %p228
      %p230 = scmp.ne.s32.totalorder %s222, %s224
      %p231 = scmp.eq.s32.totalorder %s36, 1
      %p232 = por %p230, %p231
      %p233 = scmp.ne.s32.totalorder %s224, %s225
      %p234 = scmp.eq.s32.totalorder %s36, 0
      %p235 = por %p233, %p234
      %p236 = scmp.ne.s32.totalorder %s224, %s225
      %p237 = scmp.eq.s32.totalorder %s37, 1
      %p238 = por %p236, %p237
      %p240 = scmp.ne.s32.totalorder %s225, %s239
      %p241 = scmp.eq.s32.totalorder %s37, 0
      %p242 = por %p240, %p241
      %s244 = sadd.s32 %s243, 1
      %p247 = scmp.eq.s32.totalorder %s31, 1
      %p248 = scmp.ne.s32.totalorder %s243, %s245
      %p249 = scmp.eq.s32.totalorder %s31, 0
      %p250 = por %p248, %p249
      %p251 = scmp.ne.s32.totalorder %s243, %s245
      %p252 = scmp.eq.s32.totalorder %s36, 1
      %p253 = por %p251, %p252
      %p254 = scmp.ne.s32.totalorder %s245, %s246
      %p255 = scmp.eq.s32.totalorder %s36, 0
      %p256 = por %p254, %p255
      %p257 = scmp.ne.s32.totalorder %s245, %s246
      %p258 = scmp.eq.s32.totalorder %s37, 1
      %p259 = por %p257, %p258
      %p261 = scmp.ne.s32.totalorder %s246, %s260
      %p262 = scmp.eq.s32.totalorder %s37, 0
      %p263 = por %p261, %p262
      %s265 = sadd.s32 %s264, 1
      %p268 = scmp.eq.s32.totalorder %s31, 1
      %p269 = scmp.ne.s32.totalorder %s264, %s266
      %p270 = scmp.eq.s32.totalorder %s31, 0
      %p271 = por %p269, %p270
      %p272 = scmp.ne.s32.totalorder %s264, %s266
      %p273 = scmp.eq.s32.totalorder %s36, 1
      %p274 = por %p272, %p273
      %p275 = scmp.ne.s32.totalorder %s266, %s267
      %p276 = scmp.eq.s32.totalorder %s36, 0
      %p277 = por %p275, %p276
      %p278 = scmp.ne.s32.totalorder %s266, %s267
      %p279 = scmp.eq.s32.totalorder %s37, 1
      %p280 = por %p278, %p279
      %p282 = scmp.ne.s32.totalorder %s267, %s281
      %p283 = scmp.eq.s32.totalorder %s37, 0
      %p284 = por %p282, %p283
      %s286 = sadd.s32 %s285, 1
      %p289 = scmp.eq.s32.totalorder %s31, 1
      %p290 = scmp.ne.s32.totalorder %s285, %s287
      %p291 = scmp.eq.s32.totalorder %s31, 0
      %p292 = por %p290, %p291
      %p293 = scmp.ne.s32.totalorder %s285, %s287
      %p294 = scmp.eq.s32.totalorder %s36, 1
      %p295 = por %p293, %p294
      %p296 = scmp.ne.s32.totalorder %s287, %s288
      %p297 = scmp.eq.s32.totalorder %s36, 0
      %p298 = por %p296, %p297
      %p299 = scmp.ne.s32.totalorder %s287, %s288
      %p300 = scmp.eq.s32.totalorder %s37, 1
      %p301 = por %p299, %p300
      %p303 = scmp.ne.s32.totalorder %s288, %s302
      %p304 = scmp.eq.s32.totalorder %s37, 0
      %p305 = por %p303, %p304
      %s307 = sadd.s32 %s306, 1
      %p310 = scmp.eq.s32.totalorder %s31, 1
      %p311 = scmp.ne.s32.totalorder %s306, %s308
      %p312 = scmp.eq.s32.totalorder %s31, 0
      %p313 = por %p311, %p312
      %p314 = scmp.ne.s32.totalorder %s306, %s308
      %p315 = scmp.eq.s32.totalorder %s36, 1
      %p316 = por %p314, %p315
      %p317 = scmp.ne.s32.totalorder %s308, %s309
      %p318 = scmp.eq.s32.totalorder %s36, 0
      %p319 = por %p317, %p318
      %p320 = scmp.ne.s32.totalorder %s308, %s309
      %p321 = scmp.eq.s32.totalorder %s37, 1
      %p322 = por %p320, %p321
      %p324 = scmp.ne.s32.totalorder %s309, %s323
      %p325 = scmp.eq.s32.totalorder %s37, 0
      %p326 = por %p324, %p325
      %s327 = ssub.s32 %s38, %s50
      %s328 = ssub.s32 %s39, %s46
      %s329 = sor.u32 %s327, %s328
      %p330 = scmp.eq.s32.totalorder %s329, 0
      %s332 = sadd.s32 %s331, 1
      %s333 = scalar_select %p330, %s331, %s332
      %p336 = pneg %p330
      %p337 = scmp.eq.s32.totalorder %s31, 1
      %p338 = por %p336, %p337
      %p339 = scmp.ne.s32.totalorder %s331, %s334
      %p340 = scmp.eq.s32.totalorder %s31, 0
      %p341 = por %p339, %p340
      %p342 = scmp.ne.s32.totalorder %s331, %s334
      %p343 = scmp.eq.s32.totalorder %s36, 1
      %p344 = por %p342, %p343
      %p345 = scmp.ne.s32.totalorder %s334, %s335
      %p346 = scmp.eq.s32.totalorder %s36, 0
      %p347 = por %p345, %p346
      %p348 = scmp.ne.s32.totalorder %s334, %s335
      %p349 = scmp.eq.s32.totalorder %s37, 1
      %p350 = por %p348, %p349
      %p352 = scmp.ne.s32.totalorder %s335, %s351
      %p353 = scmp.eq.s32.totalorder %s37, 0
      %p354 = por %p352, %p353
      %p355 = scmp.le.s32.totalorder 1, %s31
      %p356 = scmp.lt.s32.totalorder %s31, 3
      %p357 = pnand %p355, %p356
      %p358 = pneg %p357
      // Predicated region
      $region9: #{tpu_custom_call.1} parent=5 // pred_check
        _
      $region10: #{tpu_custom_call.1} parent=5 // pred_check_branch
        %360 = sbr.rel (%p357) target = $region12
      $region11: #{tpu_custom_call.1} parent=5 // pred_region
        %s361 = ssub.s32 %s31, 1
        // Predicated region
        $region13: #{tpu_custom_call.1} parent=11 // pred_check
          %p362 = pneg %p172
        $region14: #{tpu_custom_call.1} parent=11 // pred_check_branch
          %364 = sbr.rel (%p362) target = $region16
        $region15: #{tpu_custom_call.1} parent=11 // pred_region
          %s366 = ssub.s32 256, 256
          %367 = vsyncadd [#allocation10], %s366
          %s368 = sshll.u32 [#allocation11], 4
          %s369 = int_to_ptr.vmem [resolvable:$true] %s368
          %374 = dma.hbm_to_vmem [thread:$0]  %s4, 256, %s369, [#allocation10], 64, 64, 4
        $region16: #{tpu_custom_call.1} parent=11 // pred_fallthru
          _
        // Predicated region
        $region17: #{tpu_custom_call.1} parent=11 // pred_check
          %p375 = pneg %p193
        $region18: #{tpu_custom_call.1} parent=11 // pred_check_branch
          %377 = sbr.rel (%p375) target = $region20
        $region19: #{tpu_custom_call.1} parent=11 // pred_region
          _
        $region20: #{tpu_custom_call.1} parent=11 // pred_fallthru
          _
        // Predicated region
        $region21: #{tpu_custom_call.1} parent=11 // pred_check
          %p378 = pneg %p214
        $region22: #{tpu_custom_call.1} parent=11 // pred_check_branch
          %380 = sbr.rel (%p378) target = $region24
        $region23: #{tpu_custom_call.1} parent=11 // pred_region
          _
        $region24: #{tpu_custom_call.1} parent=11 // pred_fallthru
          _
        // Predicated region
        $region25: #{tpu_custom_call.1} parent=11 // pred_check
          %p381 = pneg %p235
        $region26: #{tpu_custom_call.1} parent=11 // pred_check_branch
          %383 = sbr.rel (%p381) target = $region28
        $region27: #{tpu_custom_call.1} parent=11 // pred_region
          _
        $region28: #{tpu_custom_call.1} parent=11 // pred_fallthru
          _
        // Predicated region
        $region29: #{tpu_custom_call.1} parent=11 // pred_check
          %p384 = pneg %p256
        $region30: #{tpu_custom_call.1} parent=11 // pred_check_branch
          %386 = sbr.rel (%p384) target = $region32
        $region31: #{tpu_custom_call.1} parent=11 // pred_region
          %s388 = ssub.s32 256, 256
          %389 = vsyncadd [#allocation13], %s388
          %s390 = sshll.u32 [#allocation12], 4
          %s391 = int_to_ptr.vmem [resolvable:$true] %s390
          %396 = dma.hbm_to_vmem [thread:$0]  %s8, 256, %s391, [#allocation13], 64, 64, 4
        $region32: #{tpu_custom_call.1} parent=11 // pred_fallthru
          _
        // Predicated region
        $region33: #{tpu_custom_call.1} parent=11 // pred_check
          %p397 = pneg %p277
        $region34: #{tpu_custom_call.1} parent=11 // pred_check_branch
          %399 = sbr.rel (%p397) target = $region36
        $region35: #{tpu_custom_call.1} parent=11 // pred_region
          %s401 = ssub.s32 16, 16
          %402 = vsyncadd [#allocation13], %s401
          %s404 = sshll.u32 [#allocation14], 4
          %s405 = int_to_ptr.vmem [resolvable:$true] %s404
          %407 = dma.hbm_to_vmem [thread:$0]  %s9, 16, %s405, [#allocation13]
        $region36: #{tpu_custom_call.1} parent=11 // pred_fallthru
          _
        // Predicated region
        $region37: #{tpu_custom_call.1} parent=11 // pred_check
          %p408 = pneg %p298
        $region38: #{tpu_custom_call.1} parent=11 // pred_check_branch
          %410 = sbr.rel (%p408) target = $region40
        $region39: #{tpu_custom_call.1} parent=11 // pred_region
          _
        $region40: #{tpu_custom_call.1} parent=11 // pred_fallthru
          _
        // Predicated region
        $region41: #{tpu_custom_call.1} parent=11 // pred_check
          %p411 = pneg %p319
        $region42: #{tpu_custom_call.1} parent=11 // pred_check_branch
          %413 = sbr.rel (%p411) target = $region44
        $region43: #{tpu_custom_call.1} parent=11 // pred_region
          _
        $region44: #{tpu_custom_call.1} parent=11 // pred_fallthru
          _
      $region12: #{tpu_custom_call.1} parent=5 // pred_fallthru
        _
      %p414 = scmp.lt.s32.totalorder %s31, 2
      // Predicated region
      $region45: #{tpu_custom_call.1} parent=5 // pred_check
        %p415 = pneg %p414
      $region46: #{tpu_custom_call.1} parent=5 // pred_check_branch
        %417 = sbr.rel (%p415) target = $region48
      $region47: #{tpu_custom_call.1} parent=5 // pred_region
        // Predicated region
        $region49: #{tpu_custom_call.1} parent=47 // pred_check
          %p418 = pneg %p65
        $region50: #{tpu_custom_call.1} parent=47 // pred_check_branch
          %420 = sbr.rel (%p418) target = $region52
        $region51: #{tpu_custom_call.1} parent=47 // pred_region
          %s421 = sand.u32 %s55, 1
          %s422 = scalar_lea.sflag [#allocation4], %s421
          %s423 = sand.u32 %s55, 1
          %s424 = smul.addr %s423, 4
          %s425 = scalar_lea.vmem [#allocation3], %s424
          %s427 = ssub.s32 64, 64
          %428 = vsyncadd %s422, %s427
          %s429 = sadd.s32 %s39, %s38
          %s430 = smul.addr %s429, 64
          %s431 = scalar_lea.hbm %s0, %s430
          %s433 = sshll.u32 %s425, 4
          %s434 = int_to_ptr.vmem [resolvable:$true] %s433
          %436 = dma.hbm_to_vmem [thread:$0]  %s431, 64, %s434, %s422
        $region52: #{tpu_custom_call.1} parent=47 // pred_fallthru
          _
        // Predicated region
        $region53: #{tpu_custom_call.1} parent=47 // pred_check
          %p437 = pneg %p91
        $region54: #{tpu_custom_call.1} parent=47 // pred_check_branch
          %439 = sbr.rel (%p437) target = $region56
        $region55: #{tpu_custom_call.1} parent=47 // pred_region
          %s440 = sand.u32 %s31, 1
          %s441 = scalar_lea.sflag [#allocation7], %s440
          %s442 = sand.u32 %s81, 1
          %s443 = smul.addr %s442, 4
          %s444 = scalar_lea.vmem [#allocation6], %s443
          %s446 = ssub.s32 64, 64
          %447 = vsyncadd %s441, %s446
          %s448 = smul.addr %s38, 64
          %s449 = scalar_lea.hbm %s1, %s448
          %s451 = sshll.u32 %s444, 4
          %s452 = int_to_ptr.vmem [resolvable:$true] %s451
          %454 = dma.hbm_to_vmem [thread:$0]  %s449, 64, %s452, %s441
        $region56: #{tpu_custom_call.1} parent=47 // pred_fallthru
          _
        // Predicated region
        $region57: #{tpu_custom_call.1} parent=47 // pred_check
          %p455 = pneg %p117
        $region58: #{tpu_custom_call.1} parent=47 // pred_check_branch
          %457 = sbr.rel (%p455) target = $region60
        $region59: #{tpu_custom_call.1} parent=47 // pred_region
          %s458 = sand.u32 %s31, 1
          %s459 = scalar_lea.sflag [#allocation7], %s458
          %s460 = sand.u32 %s107, 1
          %s461 = smul.addr %s460, 4
          %s462 = scalar_lea.vmem [#allocation8], %s461
          %s464 = ssub.s32 64, 64
          %465 = vsyncadd %s459, %s464
          %s466 = smul.addr %s38, 64
          %s467 = scalar_lea.hbm %s2, %s466
          %s469 = sshll.u32 %s462, 4
          %s470 = int_to_ptr.vmem [resolvable:$true] %s469
          %472 = dma.hbm_to_vmem [thread:$0]  %s467, 64, %s470, %s459
        $region60: #{tpu_custom_call.1} parent=47 // pred_fallthru
          _
        // Predicated region
        $region61: #{tpu_custom_call.1} parent=47 // pred_check
          %p473 = pneg %p145
        $region62: #{tpu_custom_call.1} parent=47 // pred_check_branch
          %475 = sbr.rel (%p473) target = $region64
        $region63: #{tpu_custom_call.1} parent=47 // pred_region
          %s476 = sand.u32 %s31, 1
          %s477 = scalar_lea.sflag [#allocation10], %s476
          %s478 = sand.u32 %s135, 1
          %s479 = smul.addr %s478, 4
          %s480 = scalar_lea.vmem [#allocation9], %s479
          %s482 = ssub.s32 64, 64
          %483 = vsyncadd %s477, %s482
          %s484 = sadd.s32 %s39, %s38
          %s485 = smul.addr %s484, 64
          %s486 = scalar_lea.hbm %s3, %s485
          %s488 = sshll.u32 %s480, 4
          %s489 = int_to_ptr.vmem [resolvable:$true] %s488
          %491 = dma.hbm_to_vmem [thread:$0]  %s486, 64, %s489, %s477
        $region64: #{tpu_custom_call.1} parent=47 // pred_fallthru
          _
      $region48: #{tpu_custom_call.1} parent=5 // pred_fallthru
        _
      %p492 = scmp.le.s32.totalorder 1, %s31
      %p493 = scmp.lt.s32.totalorder %s31, 3
      %p494 = pnand %p492, %p493
      %p495 = pneg %p494
      // Predicated region
      $region65: #{tpu_custom_call.1} parent=5 // pred_check
        _
      $region66: #{tpu_custom_call.1} parent=5 // pred_check_branch
        %497 = sbr.rel (%p494) target = $region68
      $region67: #{tpu_custom_call.1} parent=5 // pred_region
        %s498 = ssub.s32 %s31, 1
        %s499 = sand.u32 %s58, 1
        %s500 = scalar_lea.sflag [#allocation4], %s499
        %s501 = sand.u32 %s58, 1
        %s502 = smul.addr %s501, 4
        %s503 = scalar_lea.vmem [#allocation3], %s502
        // Predicated region
        $region69: #{tpu_custom_call.1} parent=67 // pred_check
          %p504 = pneg %p71
        $region70: #{tpu_custom_call.1} parent=67 // pred_check_branch
          %506 = sbr.rel (%p504) target = $region72
        $region71: #{tpu_custom_call.1} parent=67 // pred_region
          %507 = dma.done %s500, 64
        $region72: #{tpu_custom_call.1} parent=67 // pred_fallthru
          _
        %s508 = sand.u32 %s36, 1
        %s509 = scalar_lea.sflag [#allocation7], %s508
        %s510 = sand.u32 %s84, 1
        %s511 = smul.addr %s510, 4
        %s512 = scalar_lea.vmem [#allocation6], %s511
        // Predicated region
        $region73: #{tpu_custom_call.1} parent=67 // pred_check
          %p513 = pneg %p97
        $region74: #{tpu_custom_call.1} parent=67 // pred_check_branch
          %515 = sbr.rel (%p513) target = $region76
        $region75: #{tpu_custom_call.1} parent=67 // pred_region
          %516 = dma.done %s509, 64
        $region76: #{tpu_custom_call.1} parent=67 // pred_fallthru
          _
        %s517 = sand.u32 %s36, 1
        %s518 = scalar_lea.sflag [#allocation7], %s517
        %s519 = sand.u32 %s110, 1
        %s520 = smul.addr %s519, 4
        %s521 = scalar_lea.vmem [#allocation8], %s520
        // Predicated region
        $region77: #{tpu_custom_call.1} parent=67 // pred_check
          %p522 = pneg %p123
        $region78: #{tpu_custom_call.1} parent=67 // pred_check_branch
          %524 = sbr.rel (%p522) target = $region80
        $region79: #{tpu_custom_call.1} parent=67 // pred_region
          %525 = dma.done %s518, 64
        $region80: #{tpu_custom_call.1} parent=67 // pred_fallthru
          _
        %s526 = sand.u32 %s36, 1
        %s527 = scalar_lea.sflag [#allocation10], %s526
        %s528 = sand.u32 %s138, 1
        %s529 = smul.addr %s528, 4
        %s530 = scalar_lea.vmem [#allocation9], %s529
        // Predicated region
        $region81: #{tpu_custom_call.1} parent=67 // pred_check
          %p531 = pneg %p151
        $region82: #{tpu_custom_call.1} parent=67 // pred_check_branch
          %533 = sbr.rel (%p531) target = $region84
        $region83: #{tpu_custom_call.1} parent=67 // pred_region
          %534 = dma.done %s527, 64
        $region84: #{tpu_custom_call.1} parent=67 // pred_fallthru
          _
        // Predicated region
        $region85: #{tpu_custom_call.1} parent=67 // pred_check
          %p535 = pneg %p172
        $region86: #{tpu_custom_call.1} parent=67 // pred_check_branch
          %537 = sbr.rel (%p535) target = $region88
        $region87: #{tpu_custom_call.1} parent=67 // pred_region
          %538 = dma.done [#allocation10], 256
        $region88: #{tpu_custom_call.1} parent=67 // pred_fallthru
          _
        // Predicated region
        $region89: #{tpu_custom_call.1} parent=67 // pred_check
          %p539 = pneg %p256
        $region90: #{tpu_custom_call.1} parent=67 // pred_check_branch
          %541 = sbr.rel (%p539) target = $region92
        $region91: #{tpu_custom_call.1} parent=67 // pred_region
          %542 = dma.done [#allocation13], 256
        $region92: #{tpu_custom_call.1} parent=67 // pred_fallthru
          _
        // Predicated region
        $region93: #{tpu_custom_call.1} parent=67 // pred_check
          %p543 = pneg %p277
        $region94: #{tpu_custom_call.1} parent=67 // pred_check_branch
          %545 = sbr.rel (%p543) target = $region96
        $region95: #{tpu_custom_call.1} parent=67 // pred_region
          %546 = dma.done [#allocation13], 16
        $region96: #{tpu_custom_call.1} parent=67 // pred_fallthru
          _
        %s547 = sand.u32 %s58, 1
        %s548 = scalar_lea.sflag [#allocation4], %s547
        %s549 = sand.u32 %s58, 1
        %s550 = smul.addr %s549, 4
        %s551 = scalar_lea.vmem [#allocation3], %s550
        %p552 = pneg %p71
        %p553 = pneg %p68
        %s554 = sand.u32 %s36, 1
        %s555 = scalar_lea.sflag [#allocation7], %s554
        %s556 = sand.u32 %s84, 1
        %s557 = smul.addr %s556, 4
        %s558 = scalar_lea.vmem [#allocation6], %s557
        %p559 = pneg %p97
        %p560 = pneg %p94
        %s561 = sand.u32 %s36, 1
        %s562 = scalar_lea.sflag [#allocation7], %s561
        %s563 = sand.u32 %s110, 1
        %s564 = smul.addr %s563, 4
        %s565 = scalar_lea.vmem [#allocation8], %s564
        %p566 = pneg %p123
        %p567 = pneg %p120
        %s568 = sand.u32 %s36, 1
        %s569 = scalar_lea.sflag [#allocation10], %s568
        %s570 = sand.u32 %s138, 1
        %s571 = smul.addr %s570, 4
        %s572 = scalar_lea.vmem [#allocation9], %s571
        %p573 = pneg %p151
        %p574 = pneg %p148
        %p575 = pneg %p172
        %p576 = pneg %p169
        %p577 = pneg %p193
        %p578 = pneg %p190
        %p579 = pneg %p214
        %p580 = pneg %p211
        %p581 = pneg %p235
        %p582 = pneg %p232
        %p583 = pneg %p256
        %p584 = pneg %p253
        %p585 = pneg %p277
        %p586 = pneg %p274
        %p587 = pneg %p298
        %p588 = pneg %p295
        %p589 = pneg %p319
        %p590 = pneg %p316
        %p591 = pneg %p347
        %p592 = pneg %p344
        %s593 = sand.u32 %s334, 1
        %s594 = scalar_lea.sflag [#allocation5], %s593
        %s595 = sand.u32 %s334, 1
        %s596 = smul.addr %s595, 8
        %s597 = scalar_lea.vmem [#allocation15], %s596
        %v601 = vld [vmem:[%s503] sm:$0xf]
        %v602 = vld [vmem:[%s512] sm:$0xf]
        %v603 = vld [vmem:[%s521] sm:$0xf]
        %v604 = vld [vmem:[%s530] sm:$0xf]
        %vm605 = vcmp.ne.bf16.partialorder %v604, 0
        %v606 = vld [vmem:[#allocation11] sm:$0xf]
        %v607 = vld [vmem:[#allocation11 + $0x4] sm:$0xf]
        %v608 = vld [vmem:[#allocation11 + $0x8] sm:$0xf]
        %v609 = vld [vmem:[#allocation11 + $0xc] sm:$0xf]
        %v610 = vld [vmem:[%s5] sm:$0x1]
        %v612 = vlaneseq
        %v613 = vshrl.u32 %v612, 7
        %v614 = vsub.s32 0, %v613
        %v615 = vrot.slane %v610, %v614
        %v621 = vunpack.c.l.b16 %v606
        %v622 = vunpack.c.l.b16 %v607
        %v623 = vunpack.c.l.b16 %v608
        %v624 = vunpack.c.l.b16 %v609
        %v625 = vpack.c.b16 %v622, %v621
        %v626 = vpack.c.b16 %v624, %v623
        %vm629 = vcmask 261120
        %v631 = vsel %vm629, %v601, 0
        %633 = vmatprep.subr.bf16.mxu0 0
        %634 = vmatpush1.bf16.msra.mxu0 %v625
        %635 = vmatprep.subr.bf16.mxu0 0
        %636 = vmatpush1.bf16.msra.mxu0 %v626
        %637 = vmatprep.subr.bf16.mxu0 0
        %638 = vmatpush1.bf16.msra.mxu0 0
        %639 = vmatprep.subr.bf16.mxu0 0
        %640 = vmatpush1.bf16.msra.mxu0 0
        %641 = vmatprep.subr.bf16.mxu0 0
        %642 = vmatpush1.bf16.msra.mxu0 0
        %643 = vmatprep.subr.bf16.mxu0 0
        %644 = vmatpush1.bf16.msra.mxu0 0
        %645 = vmatprep.subr.bf16.mxu0 0
        %646 = vmatpush1.bf16.msra.mxu0 0
        %647 = vmatprep.subr.bf16.mxu0 0
        %648 = vmatpush1.bf16.msra.mxu0 0
        %649 = vmatprep.subr.bf16.mxu0 0
        %650 = vmatpush1.bf16.msra.mxu0 0
        %651 = vmatprep.subr.bf16.mxu0 0
        %652 = vmatpush1.bf16.msra.mxu0 0
        %653 = vmatprep.subr.bf16.mxu0 0
        %654 = vmatpush1.bf16.msra.mxu0 0
        %655 = vmatprep.subr.bf16.mxu0 0
        %656 = vmatpush1.bf16.msra.mxu0 0
        %657 = vmatprep.subr.bf16.mxu0 0
        %658 = vmatpush1.bf16.msra.mxu0 0
        %659 = vmatprep.subr.bf16.mxu0 0
        %660 = vmatpush1.bf16.msra.mxu0 0
        %661 = vmatprep.subr.bf16.mxu0 0
        %662 = vmatpush1.bf16.msra.mxu0 0
        %663 = vmatprep.subr.bf16.mxu0 0
        %664 = vmatpush1.bf16.msra.mxu0 0
        %665 = vmatprep.mubr.bf16.mxu0 0
        %666 = vmatmul.mubr.bf16.gmra.mrb[0].mxu0 %v631
        %v667 = vpop.f32.mrb[0].mxu0
        %v668 = vadd.f32 %v615, %v667
        %v669 = vpop.f32.mrb[0].mxu0
        %v670 = vpop.f32.mrb[0].mxu0
        %v671 = vpop.f32.mrb[0].mxu0
        %672 = vdwg.mxu0
        %v673 = vld [vmem:[%s6] sm:$0xf]
        %v674 = vld [vmem:[%s6 + $0x4] sm:$0xf]
        %v675 = vld [vmem:[%s6 + $0x8] sm:$0xf]
        %v676 = vld [vmem:[%s6 + $0xc] sm:$0xf]
        %v677 = vld [vmem:[%s7] sm:$0x1]
        %v679 = vlaneseq
        %v680 = vshrl.u32 %v679, 7
        %v681 = vsub.s32 0, %v680
        %v682 = vrot.slane %v677, %v681
        %v688 = vunpack.c.l.b16 %v673
        %v689 = vunpack.c.l.b16 %v674
        %v690 = vunpack.c.l.b16 %v675
        %v691 = vunpack.c.l.b16 %v676
        %v692 = vpack.c.b16 %v689, %v688
        %v693 = vpack.c.b16 %v691, %v690
        %v697 = vsel %vm629, %v602, 0
        %699 = vmatprep.subr.bf16.mxu0 0
        %700 = vmatpush1.bf16.msra.mxu0 %v692
        %701 = vmatprep.subr.bf16.mxu0 0
        %702 = vmatpush1.bf16.msra.mxu0 %v693
        %703 = vmatprep.subr.bf16.mxu0 0
        %704 = vmatpush1.bf16.msra.mxu0 0
        %705 = vmatprep.subr.bf16.mxu0 0
        %706 = vmatpush1.bf16.msra.mxu0 0
        %707 = vmatprep.subr.bf16.mxu0 0
        %708 = vmatpush1.bf16.msra.mxu0 0
        %709 = vmatprep.subr.bf16.mxu0 0
        %710 = vmatpush1.bf16.msra.mxu0 0
        %711 = vmatprep.subr.bf16.mxu0 0
        %712 = vmatpush1.bf16.msra.mxu0 0
        %713 = vmatprep.subr.bf16.mxu0 0
        %714 = vmatpush1.bf16.msra.mxu0 0
        %715 = vmatprep.subr.bf16.mxu0 0
        %716 = vmatpush1.bf16.msra.mxu0 0
        %717 = vmatprep.subr.bf16.mxu0 0
        %718 = vmatpush1.bf16.msra.mxu0 0
        %719 = vmatprep.subr.bf16.mxu0 0
        %720 = vmatpush1.bf16.msra.mxu0 0
        %721 = vmatprep.subr.bf16.mxu0 0
        %722 = vmatpush1.bf16.msra.mxu0 0
        %723 = vmatprep.subr.bf16.mxu0 0
        %724 = vmatpush1.bf16.msra.mxu0 0
        %725 = vmatprep.subr.bf16.mxu0 0
        %726 = vmatpush1.bf16.msra.mxu0 0
        %727 = vmatprep.subr.bf16.mxu0 0
        %728 = vmatpush1.bf16.msra.mxu0 0
        %729 = vmatprep.subr.bf16.mxu0 0
        %730 = vmatpush1.bf16.msra.mxu0 0
        %731 = vmatprep.mubr.bf16.mxu0 0
        %732 = vmatmul.mubr.bf16.gmra.mrb[0].mxu0 %v697
        %v733 = vpop.f32.mrb[0].mxu0
        %v734 = vadd.f32 %v682, %v733
        %v735 = vpop.f32.mrb[0].mxu0
        %v736 = vpop.f32.mrb[0].mxu0
        %v737 = vpop.f32.mrb[0].mxu0
        %738 = vdwg.mxu0
        %v739 = vld [vmem:[#allocation12] sm:$0xf]
        %v740 = vld [vmem:[#allocation12 + $0x4] sm:$0xf]
        %v741 = vld [vmem:[#allocation12 + $0x8] sm:$0xf]
        %v742 = vld [vmem:[#allocation12 + $0xc] sm:$0xf]
        %v743 = vld [vmem:[#allocation14] sm:$0x1]
        %v745 = vlaneseq
        %v746 = vshrl.u32 %v745, 7
        %v747 = vsub.s32 0, %v746
        %v748 = vrot.slane %v743, %v747
        %v754 = vunpack.c.l.b16 %v739
        %v755 = vunpack.c.l.b16 %v740
        %v756 = vunpack.c.l.b16 %v741
        %v757 = vunpack.c.l.b16 %v742
        %v758 = vpack.c.b16 %v755, %v754
        %v759 = vpack.c.b16 %v757, %v756
        %v763 = vsel %vm629, %v603, 0
        %765 = vmatprep.subr.bf16.mxu0 0
        %766 = vmatpush1.bf16.msra.mxu0 %v758
        %767 = vmatprep.subr.bf16.mxu0 0
        %768 = vmatpush1.bf16.msra.mxu0 %v759
        %769 = vmatprep.subr.bf16.mxu0 0
        %770 = vmatpush1.bf16.msra.mxu0 0
        %771 = vmatprep.subr.bf16.mxu0 0
        %772 = vmatpush1.bf16.msra.mxu0 0
        %773 = vmatprep.subr.bf16.mxu0 0
        %774 = vmatpush1.bf16.msra.mxu0 0
        %775 = vmatprep.subr.bf16.mxu0 0
        %776 = vmatpush1.bf16.msra.mxu0 0
        %777 = vmatprep.subr.bf16.mxu0 0
        %778 = vmatpush1.bf16.msra.mxu0 0
        %779 = vmatprep.subr.bf16.mxu0 0
        %780 = vmatpush1.bf16.msra.mxu0 0
        %781 = vmatprep.subr.bf16.mxu0 0
        %782 = vmatpush1.bf16.msra.mxu0 0
        %783 = vmatprep.subr.bf16.mxu0 0
        %784 = vmatpush1.bf16.msra.mxu0 0
        %785 = vmatprep.subr.bf16.mxu0 0
        %786 = vmatpush1.bf16.msra.mxu0 0
        %787 = vmatprep.subr.bf16.mxu0 0
        %788 = vmatpush1.bf16.msra.mxu0 0
        %789 = vmatprep.subr.bf16.mxu0 0
        %790 = vmatpush1.bf16.msra.mxu0 0
        %791 = vmatprep.subr.bf16.mxu0 0
        %792 = vmatpush1.bf16.msra.mxu0 0
        %793 = vmatprep.subr.bf16.mxu0 0
        %794 = vmatpush1.bf16.msra.mxu0 0
        %795 = vmatprep.subr.bf16.mxu0 0
        %796 = vmatpush1.bf16.msra.mxu0 0
        %797 = vmatprep.mubr.bf16.mxu0 0
        %798 = vmatmul.mubr.bf16.gmra.mrb[0].mxu0 %v763
        %v799 = vpop.f32.mrb[0].mxu0
        %v800 = vadd.f32 %v748, %v799
        %v801 = vpop.f32.mrb[0].mxu0
        %v802 = vpop.f32.mrb[0].mxu0
        %v803 = vpop.f32.mrb[0].mxu0
        %804 = vdwg.mxu0
        %v805 = vmul.f32 %v668, 0.35355338
        %807 = vrot.lane.b32.xlu0 %v805, 120
        %v808 = vpop.permute.xlu0 %807
        %810 = vrot.lane.b32.xlu0 %v805, 112
        %v811 = vpop.permute.xlu0 %810
        %813 = vrot.lane.b32.xlu0 %v805, 104
        %v814 = vpop.permute.xlu0 %813
        %v816 = vpack.c.bf16 %v805, %v805
        %v817 = vpack.c.bf16 %v808, %v808
        %v818 = vpack.c.bf16 %v811, %v811
        %v819 = vpack.c.bf16 %v814, %v814
        %821 = vrot.lane.b32.xlu0 %v734, 120
        %v822 = vpop.permute.xlu0 %821
        %824 = vrot.lane.b32.xlu0 %v734, 112
        %v825 = vpop.permute.xlu0 %824
        %827 = vrot.lane.b32.xlu0 %v734, 104
        %v828 = vpop.permute.xlu0 %827
        %v830 = vpack.c.bf16 %v734, %v734
        %v831 = vpack.c.bf16 %v822, %v822
        %v832 = vpack.c.bf16 %v825, %v825
        %v833 = vpack.c.bf16 %v828, %v828
        %835 = vrot.lane.b32.xlu0 %v800, 120
        %v836 = vpop.permute.xlu0 %835
        %838 = vrot.lane.b32.xlu0 %v800, 112
        %v839 = vpop.permute.xlu0 %838
        %841 = vrot.lane.b32.xlu0 %v800, 104
        %v842 = vpop.permute.xlu0 %841
        %v844 = vpack.c.bf16 %v800, %v800
        %v845 = vpack.c.bf16 %v836, %v836
        %v846 = vpack.c.bf16 %v839, %v839
        %v847 = vpack.c.bf16 %v842, %v842
        %vm848 = vcmask 64512
        %v850 = vsel %vm848, %v816, 0
        %v853 = vsel %vm848, %v830, 0
        %855 = vmatprep.subr.bf16.mxu0 0
        %856 = vmatpush1.bf16.xpose.msra.mxu0 %v853
        %857 = vmatprep.subr.bf16.mxu0 0
        %858 = vmatpush1.bf16.xpose.msra.mxu0 0
        %859 = vmatprep.subr.bf16.mxu0 0
        %860 = vmatpush1.bf16.xpose.msra.mxu0 0
        %861 = vmatprep.subr.bf16.mxu0 0
        %862 = vmatpush1.bf16.xpose.msra.mxu0 0
        %863 = vmatprep.subr.bf16.mxu0 0
        %864 = vmatpush1.bf16.xpose.msra.mxu0 0
        %865 = vmatprep.subr.bf16.mxu0 0
        %866 = vmatpush1.bf16.xpose.msra.mxu0 0
        %867 = vmatprep.subr.bf16.mxu0 0
        %868 = vmatpush1.bf16.xpose.msra.mxu0 0
        %869 = vmatprep.subr.bf16.mxu0 0
        %870 = vmatpush1.bf16.xpose.msra.mxu0 0
        %871 = vmatprep.subr.bf16.mxu0 0
        %872 = vmatpush1.bf16.xpose.msra.mxu0 0
        %873 = vmatprep.subr.bf16.mxu0 0
        %874 = vmatpush1.bf16.xpose.msra.mxu0 0
        %875 = vmatprep.subr.bf16.mxu0 0
        %876 = vmatpush1.bf16.xpose.msra.mxu0 0
        %877 = vmatprep.subr.bf16.mxu0 0
        %878 = vmatpush1.bf16.xpose.msra.mxu0 0
        %879 = vmatprep.subr.bf16.mxu0 0
        %880 = vmatpush1.bf16.xpose.msra.mxu0 0
        %881 = vmatprep.subr.bf16.mxu0 0
        %882 = vmatpush1.bf16.xpose.msra.mxu0 0
        %883 = vmatprep.subr.bf16.mxu0 0
        %884 = vmatpush1.bf16.xpose.msra.mxu0 0
        %885 = vmatprep.subr.bf16.mxu0 0
        %886 = vmatpush1.bf16.xpose.msra.mxu0 0
        %887 = vmatprep.mubr.bf16.mxu0 0
        %888 = vmatmul.mubr.bf16.gmra.mrb[0].mxu0 %v850
        %v889 = vpop.f32.mrb[0].mxu0
        %v890 = vadd.f32 0.0, %v889
        %v891 = vpop.f32.mrb[0].mxu0
        %v892 = vpop.f32.mrb[0].mxu0
        %v893 = vpop.f32.mrb[0].mxu0
        %894 = vdwg.mxu0
        %v896 = vsel %vm848, %v817, 0
        %v899 = vsel %vm848, %v831, 0
        %901 = vmatprep.subr.bf16.mxu0 0
        %902 = vmatpush1.bf16.xpose.msra.mxu0 %v899
        %903 = vmatprep.subr.bf16.mxu0 0
        %904 = vmatpush1.bf16.xpose.msra.mxu0 0
        %905 = vmatprep.subr.bf16.mxu0 0
        %906 = vmatpush1.bf16.xpose.msra.mxu0 0
        %907 = vmatprep.subr.bf16.mxu0 0
        %908 = vmatpush1.bf16.xpose.msra.mxu0 0
        %909 = vmatprep.subr.bf16.mxu0 0
        %910 = vmatpush1.bf16.xpose.msra.mxu0 0
        %911 = vmatprep.subr.bf16.mxu0 0
        %912 = vmatpush1.bf16.xpose.msra.mxu0 0
        %913 = vmatprep.subr.bf16.mxu0 0
        %914 = vmatpush1.bf16.xpose.msra.mxu0 0
        %915 = vmatprep.subr.bf16.mxu0 0
        %916 = vmatpush1.bf16.xpose.msra.mxu0 0
        %917 = vmatprep.subr.bf16.mxu0 0
        %918 = vmatpush1.bf16.xpose.msra.mxu0 0
        %919 = vmatprep.subr.bf16.mxu0 0
        %920 = vmatpush1.bf16.xpose.msra.mxu0 0
        %921 = vmatprep.subr.bf16.mxu0 0
        %922 = vmatpush1.bf16.xpose.msra.mxu0 0
        %923 = vmatprep.subr.bf16.mxu0 0
        %924 = vmatpush1.bf16.xpose.msra.mxu0 0
        %925 = vmatprep.subr.bf16.mxu0 0
        %926 = vmatpush1.bf16.xpose.msra.mxu0 0
        %927 = vmatprep.subr.bf16.mxu0 0
        %928 = vmatpush1.bf16.xpose.msra.mxu0 0
        %929 = vmatprep.subr.bf16.mxu0 0
        %930 = vmatpush1.bf16.xpose.msra.mxu0 0
        %931 = vmatprep.subr.bf16.mxu0 0
        %932 = vmatpush1.bf16.xpose.msra.mxu0 0
        %933 = vmatprep.mubr.bf16.mxu0 0
        %934 = vmatmul.mubr.bf16.gmra.mrb[0].mxu0 %v896
        %v935 = vpop.f32.mrb[0].mxu0
        %v936 = vadd.f32 0.0, %v935
        %v937 = vpop.f32.mrb[0].mxu0
        %v938 = vpop.f32.mrb[0].mxu0
        %v939 = vpop.f32.mrb[0].mxu0
        %940 = vdwg.mxu0
        %v942 = vsel %vm848, %v818, 0
        %v945 = vsel %vm848, %v832, 0
        %947 = vmatprep.subr.bf16.mxu0 0
        %948 = vmatpush1.bf16.xpose.msra.mxu0 %v945
        %949 = vmatprep.subr.bf16.mxu0 0
        %950 = vmatpush1.bf16.xpose.msra.mxu0 0
        %951 = vmatprep.subr.bf16.mxu0 0
        %952 = vmatpush1.bf16.xpose.msra.mxu0 0
        %953 = vmatprep.subr.bf16.mxu0 0
        %954 = vmatpush1.bf16.xpose.msra.mxu0 0
        %955 = vmatprep.subr.bf16.mxu0 0
        %956 = vmatpush1.bf16.xpose.msra.mxu0 0
        %957 = vmatprep.subr.bf16.mxu0 0
        %958 = vmatpush1.bf16.xpose.msra.mxu0 0
        %959 = vmatprep.subr.bf16.mxu0 0
        %960 = vmatpush1.bf16.xpose.msra.mxu0 0
        %961 = vmatprep.subr.bf16.mxu0 0
        %962 = vmatpush1.bf16.xpose.msra.mxu0 0
        %963 = vmatprep.subr.bf16.mxu0 0
        %964 = vmatpush1.bf16.xpose.msra.mxu0 0
        %965 = vmatprep.subr.bf16.mxu0 0
        %966 = vmatpush1.bf16.xpose.msra.mxu0 0
        %967 = vmatprep.subr.bf16.mxu0 0
        %968 = vmatpush1.bf16.xpose.msra.mxu0 0
        %969 = vmatprep.subr.bf16.mxu0 0
        %970 = vmatpush1.bf16.xpose.msra.mxu0 0
        %971 = vmatprep.subr.bf16.mxu0 0
        %972 = vmatpush1.bf16.xpose.msra.mxu0 0
        %973 = vmatprep.subr.bf16.mxu0 0
        %974 = vmatpush1.bf16.xpose.msra.mxu0 0
        %975 = vmatprep.subr.bf16.mxu0 0
        %976 = vmatpush1.bf16.xpose.msra.mxu0 0
        %977 = vmatprep.subr.bf16.mxu0 0
        %978 = vmatpush1.bf16.xpose.msra.mxu0 0
        %979 = vmatprep.mubr.bf16.mxu0 0
        %980 = vmatmul.mubr.bf16.gmra.mrb[0].mxu0 %v942
        %v981 = vpop.f32.mrb[0].mxu0
        %v982 = vadd.f32 0.0, %v981
        %v983 = vpop.f32.mrb[0].mxu0
        %v984 = vpop.f32.mrb[0].mxu0
        %v985 = vpop.f32.mrb[0].mxu0
        %986 = vdwg.mxu0
        %v988 = vsel %vm848, %v819, 0
        %v991 = vsel %vm848, %v833, 0
        %993 = vmatprep.subr.bf16.mxu0 0
        %994 = vmatpush1.bf16.xpose.msra.mxu0 %v991
        %995 = vmatprep.subr.bf16.mxu0 0
        %996 = vmatpush1.bf16.xpose.msra.mxu0 0
        %997 = vmatprep.subr.bf16.mxu0 0
        %998 = vmatpush1.bf16.xpose.msra.mxu0 0
        %999 = vmatprep.subr.bf16.mxu0 0
        %1000 = vmatpush1.bf16.xpose.msra.mxu0 0
        %1001 = vmatprep.subr.bf16.mxu0 0
        %1002 = vmatpush1.bf16.xpose.msra.mxu0 0
        %1003 = vmatprep.subr.bf16.mxu0 0
        %1004 = vmatpush1.bf16.xpose.msra.mxu0 0
        %1005 = vmatprep.subr.bf16.mxu0 0
        %1006 = vmatpush1.bf16.xpose.msra.mxu0 0
        %1007 = vmatprep.subr.bf16.mxu0 0
        %1008 = vmatpush1.bf16.xpose.msra.mxu0 0
        %1009 = vmatprep.subr.bf16.mxu0 0
        %1010 = vmatpush1.bf16.xpose.msra.mxu0 0
        %1011 = vmatprep.subr.bf16.mxu0 0
        %1012 = vmatpush1.bf16.xpose.msra.mxu0 0
        %1013 = vmatprep.subr.bf16.mxu0 0
        %1014 = vmatpush1.bf16.xpose.msra.mxu0 0
        %1015 = vmatprep.subr.bf16.mxu0 0
        %1016 = vmatpush1.bf16.xpose.msra.mxu0 0
        %1017 = vmatprep.subr.bf16.mxu0 0
        %1018 = vmatpush1.bf16.xpose.msra.mxu0 0
        %1019 = vmatprep.subr.bf16.mxu0 0
        %1020 = vmatpush1.bf16.xpose.msra.mxu0 0
        %1021 = vmatprep.subr.bf16.mxu0 0
        %1022 = vmatpush1.bf16.xpose.msra.mxu0 0
        %1023 = vmatprep.subr.bf16.mxu0 0
        %1024 = vmatpush1.bf16.xpose.msra.mxu0 0
        %1025 = vmatprep.mubr.bf16.mxu0 0
        %1026 = vmatmul.mubr.bf16.gmra.mrb[0].mxu0 %v988
        %v1027 = vpop.f32.mrb[0].mxu0
        %v1028 = vadd.f32 0.0, %v1027
        %v1029 = vpop.f32.mrb[0].mxu0
        %v1030 = vpop.f32.mrb[0].mxu0
        %v1031 = vpop.f32.mrb[0].mxu0
        %1032 = vdwg.mxu0
        %v1033 = vsel %vm605, 65537, 0
        %v1034 = vunpack.c.l.b16 %v1033
        %vm1035 = vcmp.ne.s32.totalorder %v1034, 0
        %v1036 = vsel %vm1035, 1, 0
        %vm1037 = vcmp.eq.s32.totalorder %v1036, 1
        %v1038 = vsel %vm1037, %v890, -1e+09
        %v1039 = vsel %vm1037, %v936, -1e+09
        %v1040 = vsel %vm1037, %v982, -1e+09
        %v1041 = vsel %vm1037, %v1028, -1e+09
        %v1042 = vsel %vm848, %v1038, -inf
        %1043 = vmax.xlane.f32.xlu0 %v1042
        %v1044 = vpop.xlane.xlu0 %1043
        %v1045 = vsel %vm848, %v1039, -inf
        %1046 = vmax.xlane.f32.xlu0 %v1045
        %v1047 = vpop.xlane.xlu0 %1046
        %v1048 = vsel %vm848, %v1040, -inf
        %1049 = vmax.xlane.f32.xlu0 %v1048
        %v1050 = vpop.xlane.xlu0 %1049
        %v1051 = vsel %vm848, %v1041, -inf
        %1052 = vmax.xlane.f32.xlu0 %v1051
        %v1053 = vpop.xlane.xlu0 %1052
        %v1054 = vsub.f32 %v1038, %v1044
        %v1055 = vsub.f32 %v1039, %v1047
        %v1056 = vsub.f32 %v1040, %v1050
        %v1057 = vsub.f32 %v1041, %v1053
        %v1058 = vmul.f32 %v1054, 1.442695
        %v1059 = vpow.pop %v1058
        %v1060 = vmul.f32 %v1055, 1.442695
        %v1061 = vpow.pop %v1060
        %v1062 = vmul.f32 %v1056, 1.442695
        %v1063 = vpow.pop %v1062
        %v1064 = vmul.f32 %v1057, 1.442695
        %v1065 = vpow.pop %v1064
        %v1066 = vsel %vm848, %v1059, 0.0
        %1067 = vadd.xlane.f32.xlu0 %v1066
        %v1068 = vpop.xlane.xlu0 %1067
        %v1069 = vsel %vm848, %v1061, 0.0
        %1070 = vadd.xlane.f32.xlu0 %v1069
        %v1071 = vpop.xlane.xlu0 %1070
        %v1072 = vsel %vm848, %v1063, 0.0
        %1073 = vadd.xlane.f32.xlu0 %v1072
        %v1074 = vpop.xlane.xlu0 %1073
        %v1075 = vsel %vm848, %v1065, 0.0
        %1076 = vadd.xlane.f32.xlu0 %v1075
        %v1077 = vpop.xlane.xlu0 %1076
        %v1078 = vrcp.pop %v1068
        %v1079 = vrcp.pop %v1071
        %v1080 = vrcp.pop %v1074
        %v1081 = vrcp.pop %v1077
        %v1082 = vmul.f32 %v1059, %v1078
        %v1083 = vmul.f32 %v1061, %v1079
        %v1084 = vmul.f32 %v1063, %v1080
        %v1085 = vmul.f32 %v1065, %v1081
        %v1086 = vpack.c.bf16 %v1082, %v1082
        %v1087 = vpack.c.bf16 %v1083, %v1083
        %v1088 = vpack.c.bf16 %v1084, %v1084
        %v1089 = vpack.c.bf16 %v1085, %v1085
        %v1091 = vsel %vm848, %v1086, 0
        %vm1093 = vcmask 1043456
        %v1095 = vsel %vm1093, %v844, 0
        %1097 = vmatprep.subr.bf16.mxu0 0
        %1098 = vmatpush1.bf16.msra.mxu0 %v1095
        %1099 = vmatprep.subr.bf16.mxu0 0
        %1100 = vmatpush1.bf16.msra.mxu0 0
        %1101 = vmatprep.subr.bf16.mxu0 0
        %1102 = vmatpush1.bf16.msra.mxu0 0
        %1103 = vmatprep.subr.bf16.mxu0 0
        %1104 = vmatpush1.bf16.msra.mxu0 0
        %1105 = vmatprep.subr.bf16.mxu0 0
        %1106 = vmatpush1.bf16.msra.mxu0 0
        %1107 = vmatprep.subr.bf16.mxu0 0
        %1108 = vmatpush1.bf16.msra.mxu0 0
        %1109 = vmatprep.subr.bf16.mxu0 0
        %1110 = vmatpush1.bf16.msra.mxu0 0
        %1111 = vmatprep.subr.bf16.mxu0 0
        %1112 = vmatpush1.bf16.msra.mxu0 0
        %1113 = vmatprep.subr.bf16.mxu0 0
        %1114 = vmatpush1.bf16.msra.mxu0 0
        %1115 = vmatprep.subr.bf16.mxu0 0
        %1116 = vmatpush1.bf16.msra.mxu0 0
        %1117 = vmatprep.subr.bf16.mxu0 0
        %1118 = vmatpush1.bf16.msra.mxu0 0
        %1119 = vmatprep.subr.bf16.mxu0 0
        %1120 = vmatpush1.bf16.msra.mxu0 0
        %1121 = vmatprep.subr.bf16.mxu0 0
        %1122 = vmatpush1.bf16.msra.mxu0 0
        %1123 = vmatprep.subr.bf16.mxu0 0
        %1124 = vmatpush1.bf16.msra.mxu0 0
        %1125 = vmatprep.subr.bf16.mxu0 0
        %1126 = vmatpush1.bf16.msra.mxu0 0
        %1127 = vmatprep.subr.bf16.mxu0 0
        %1128 = vmatpush1.bf16.msra.mxu0 0
        %1129 = vmatprep.mubr.bf16.mxu0 0
        %1130 = vmatmul.mubr.bf16.gmra.mrb[0].mxu0 %v1091
        %v1131 = vpop.f32.mrb[0].mxu0
        %v1132 = vadd.f32 0.0, %v1131
        %v1133 = vpop.f32.mrb[0].mxu0
        %v1134 = vpop.f32.mrb[0].mxu0
        %v1135 = vpop.f32.mrb[0].mxu0
        %1136 = vdwg.mxu0
        %v1138 = vsel %vm848, %v1087, 0
        %v1141 = vsel %vm1093, %v845, 0
        %1143 = vmatprep.subr.bf16.mxu0 0
        %1144 = vmatpush1.bf16.msra.mxu0 %v1141
        %1145 = vmatprep.subr.bf16.mxu0 0
        %1146 = vmatpush1.bf16.msra.mxu0 0
        %1147 = vmatprep.subr.bf16.mxu0 0
        %1148 = vmatpush1.bf16.msra.mxu0 0
        %1149 = vmatprep.subr.bf16.mxu0 0
        %1150 = vmatpush1.bf16.msra.mxu0 0
        %1151 = vmatprep.subr.bf16.mxu0 0
        %1152 = vmatpush1.bf16.msra.mxu0 0
        %1153 = vmatprep.subr.bf16.mxu0 0
        %1154 = vmatpush1.bf16.msra.mxu0 0
        %1155 = vmatprep.subr.bf16.mxu0 0
        %1156 = vmatpush1.bf16.msra.mxu0 0
        %1157 = vmatprep.subr.bf16.mxu0 0
        %1158 = vmatpush1.bf16.msra.mxu0 0
        %1159 = vmatprep.subr.bf16.mxu0 0
        %1160 = vmatpush1.bf16.msra.mxu0 0
        %1161 = vmatprep.subr.bf16.mxu0 0
        %1162 = vmatpush1.bf16.msra.mxu0 0
        %1163 = vmatprep.subr.bf16.mxu0 0
        %1164 = vmatpush1.bf16.msra.mxu0 0
        %1165 = vmatprep.subr.bf16.mxu0 0
        %1166 = vmatpush1.bf16.msra.mxu0 0
        %1167 = vmatprep.subr.bf16.mxu0 0
        %1168 = vmatpush1.bf16.msra.mxu0 0
        %1169 = vmatprep.subr.bf16.mxu0 0
        %1170 = vmatpush1.bf16.msra.mxu0 0
        %1171 = vmatprep.subr.bf16.mxu0 0
        %1172 = vmatpush1.bf16.msra.mxu0 0
        %1173 = vmatprep.subr.bf16.mxu0 0
        %1174 = vmatpush1.bf16.msra.mxu0 0
        %1175 = vmatprep.mubr.bf16.mxu0 0
        %1176 = vmatmul.mubr.bf16.gmra.mrb[0].mxu0 %v1138
        %v1177 = vpop.f32.mrb[0].mxu0
        %v1178 = vadd.f32 0.0, %v1177
        %v1179 = vpop.f32.mrb[0].mxu0
        %v1180 = vpop.f32.mrb[0].mxu0
        %v1181 = vpop.f32.mrb[0].mxu0
        %1182 = vdwg.mxu0
        %v1184 = vsel %vm848, %v1088, 0
        %v1187 = vsel %vm1093, %v846, 0
        %1189 = vmatprep.subr.bf16.mxu0 0
        %1190 = vmatpush1.bf16.msra.mxu0 %v1187
        %1191 = vmatprep.subr.bf16.mxu0 0
        %1192 = vmatpush1.bf16.msra.mxu0 0
        %1193 = vmatprep.subr.bf16.mxu0 0
        %1194 = vmatpush1.bf16.msra.mxu0 0
        %1195 = vmatprep.subr.bf16.mxu0 0
        %1196 = vmatpush1.bf16.msra.mxu0 0
        %1197 = vmatprep.subr.bf16.mxu0 0
        %1198 = vmatpush1.bf16.msra.mxu0 0
        %1199 = vmatprep.subr.bf16.mxu0 0
        %1200 = vmatpush1.bf16.msra.mxu0 0
        %1201 = vmatprep.subr.bf16.mxu0 0
        %1202 = vmatpush1.bf16.msra.mxu0 0
        %1203 = vmatprep.subr.bf16.mxu0 0
        %1204 = vmatpush1.bf16.msra.mxu0 0
        %1205 = vmatprep.subr.bf16.mxu0 0
        %1206 = vmatpush1.bf16.msra.mxu0 0
        %1207 = vmatprep.subr.bf16.mxu0 0
        %1208 = vmatpush1.bf16.msra.mxu0 0
        %1209 = vmatprep.subr.bf16.mxu0 0
        %1210 = vmatpush1.bf16.msra.mxu0 0
        %1211 = vmatprep.subr.bf16.mxu0 0
        %1212 = vmatpush1.bf16.msra.mxu0 0
        %1213 = vmatprep.subr.bf16.mxu0 0
        %1214 = vmatpush1.bf16.msra.mxu0 0
        %1215 = vmatprep.subr.bf16.mxu0 0
        %1216 = vmatpush1.bf16.msra.mxu0 0
        %1217 = vmatprep.subr.bf16.mxu0 0
        %1218 = vmatpush1.bf16.msra.mxu0 0
        %1219 = vmatprep.subr.bf16.mxu0 0
        %1220 = vmatpush1.bf16.msra.mxu0 0
        %1221 = vmatprep.mubr.bf16.mxu0 0
        %1222 = vmatmul.mubr.bf16.gmra.mrb[0].mxu0 %v1184
        %v1223 = vpop.f32.mrb[0].mxu0
        %v1224 = vadd.f32 0.0, %v1223
        %v1225 = vpop.f32.mrb[0].mxu0
        %v1226 = vpop.f32.mrb[0].mxu0
        %v1227 = vpop.f32.mrb[0].mxu0
        %1228 = vdwg.mxu0
        %v1230 = vsel %vm848, %v1089, 0
        %v1233 = vsel %vm1093, %v847, 0
        %1235 = vmatprep.subr.bf16.mxu0 0
        %1236 = vmatpush1.bf16.msra.mxu0 %v1233
        %1237 = vmatprep.subr.bf16.mxu0 0
        %1238 = vmatpush1.bf16.msra.mxu0 0
        %1239 = vmatprep.subr.bf16.mxu0 0
        %1240 = vmatpush1.bf16.msra.mxu0 0
        %1241 = vmatprep.subr.bf16.mxu0 0
        %1242 = vmatpush1.bf16.msra.mxu0 0
        %1243 = vmatprep.subr.bf16.mxu0 0
        %1244 = vmatpush1.bf16.msra.mxu0 0
        %1245 = vmatprep.subr.bf16.mxu0 0
        %1246 = vmatpush1.bf16.msra.mxu0 0
        %1247 = vmatprep.subr.bf16.mxu0 0
        %1248 = vmatpush1.bf16.msra.mxu0 0
        %1249 = vmatprep.subr.bf16.mxu0 0
        %1250 = vmatpush1.bf16.msra.mxu0 0
        %1251 = vmatprep.subr.bf16.mxu0 0
        %1252 = vmatpush1.bf16.msra.mxu0 0
        %1253 = vmatprep.subr.bf16.mxu0 0
        %1254 = vmatpush1.bf16.msra.mxu0 0
        %1255 = vmatprep.subr.bf16.mxu0 0
        %1256 = vmatpush1.bf16.msra.mxu0 0
        %1257 = vmatprep.subr.bf16.mxu0 0
        %1258 = vmatpush1.bf16.msra.mxu0 0
        %1259 = vmatprep.subr.bf16.mxu0 0
        %1260 = vmatpush1.bf16.msra.mxu0 0
        %1261 = vmatprep.subr.bf16.mxu0 0
        %1262 = vmatpush1.bf16.msra.mxu0 0
        %1263 = vmatprep.subr.bf16.mxu0 0
        %1264 = vmatpush1.bf16.msra.mxu0 0
        %1265 = vmatprep.subr.bf16.mxu0 0
        %1266 = vmatpush1.bf16.msra.mxu0 0
        %1267 = vmatprep.mubr.bf16.mxu0 0
        %1268 = vmatmul.mubr.bf16.gmra.mrb[0].mxu0 %v1230
        %v1269 = vpop.f32.mrb[0].mxu0
        %v1270 = vadd.f32 0.0, %v1269
        %v1271 = vpop.f32.mrb[0].mxu0
        %v1272 = vpop.f32.mrb[0].mxu0
        %v1273 = vpop.f32.mrb[0].mxu0
        %1274 = vdwg.mxu0
        %1275 = vst.msk [vmem:[#allocation2] sm:$0xff] %vm848, %v1132
        %1277 = vrot.lane.b32.xlu0 %v1178, 8
        %v1278 = vpop.permute.xlu0 %1277
        %vm1280 = vcmask 130112
        %1281 = vst.msk [vmem:[#allocation2] sm:$0xff] %vm1280, %v1278
        %1283 = vrot.lane.b32.xlu0 %v1224, 16
        %v1284 = vpop.permute.xlu0 %1283
        %vm1286 = vcmask 195712
        %1287 = vst.msk [vmem:[#allocation2] sm:$0xff] %vm1286, %v1284
        %1289 = vrot.lane.b32.xlu0 %v1270, 24
        %v1290 = vpop.permute.xlu0 %1289
        %vm1292 = vcmask 261312
        %1293 = vst.msk [vmem:[#allocation2] sm:$0xff] %vm1292, %v1290
        %v1294 = vld [vmem:[#allocation2] sm:$0xff]
        %v1295 = vpack.c.bf16 %v1294, %v1294
        %v1296 = vld [vmem:[%s10] sm:$0xf]
        %v1297 = vld [vmem:[%s10 + $0x4] sm:$0xf]
        %v1298 = vld [vmem:[%s10 + $0x8] sm:$0xf]
        %v1299 = vld [vmem:[%s10 + $0xc] sm:$0xf]
        %v1300 = vld [vmem:[%s11] sm:$0x1]
        %v1302 = vlaneseq
        %v1303 = vshrl.u32 %v1302, 7
        %v1304 = vsub.s32 0, %v1303
        %v1305 = vrot.slane %v1300, %v1304
        %v1311 = vunpack.c.l.b16 %v1296
        %v1312 = vunpack.c.l.b16 %v1297
        %v1313 = vunpack.c.l.b16 %v1298
        %v1314 = vunpack.c.l.b16 %v1299
        %v1315 = vpack.c.b16 %v1312, %v1311
        %v1316 = vpack.c.b16 %v1314, %v1313
        %v1320 = vsel %vm629, %v1295, 0
        %1322 = vmatprep.subr.bf16.mxu0 0
        %1323 = vmatpush1.bf16.msra.mxu0 %v1315
        %1324 = vmatprep.subr.bf16.mxu0 0
        %1325 = vmatpush1.bf16.msra.mxu0 %v1316
        %1326 = vmatprep.subr.bf16.mxu0 0
        %1327 = vmatpush1.bf16.msra.mxu0 0
        %1328 = vmatprep.subr.bf16.mxu0 0
        %1329 = vmatpush1.bf16.msra.mxu0 0
        %1330 = vmatprep.subr.bf16.mxu0 0
        %1331 = vmatpush1.bf16.msra.mxu0 0
        %1332 = vmatprep.subr.bf16.mxu0 0
        %1333 = vmatpush1.bf16.msra.mxu0 0
        %1334 = vmatprep.subr.bf16.mxu0 0
        %1335 = vmatpush1.bf16.msra.mxu0 0
        %1336 = vmatprep.subr.bf16.mxu0 0
        %1337 = vmatpush1.bf16.msra.mxu0 0
        %1338 = vmatprep.subr.bf16.mxu0 0
        %1339 = vmatpush1.bf16.msra.mxu0 0
        %1340 = vmatprep.subr.bf16.mxu0 0
        %1341 = vmatpush1.bf16.msra.mxu0 0
        %1342 = vmatprep.subr.bf16.mxu0 0
        %1343 = vmatpush1.bf16.msra.mxu0 0
        %1344 = vmatprep.subr.bf16.mxu0 0
        %1345 = vmatpush1.bf16.msra.mxu0 0
        %1346 = vmatprep.subr.bf16.mxu0 0
        %1347 = vmatpush1.bf16.msra.mxu0 0
        %1348 = vmatprep.subr.bf16.mxu0 0
        %1349 = vmatpush1.bf16.msra.mxu0 0
        %1350 = vmatprep.subr.bf16.mxu0 0
        %1351 = vmatpush1.bf16.msra.mxu0 0
        %1352 = vmatprep.subr.bf16.mxu0 0
        %1353 = vmatpush1.bf16.msra.mxu0 0
        %1354 = vmatprep.mubr.bf16.mxu0 0
        %1355 = vmatmul.mubr.bf16.gmra.mrb[0].mxu0 %v1320
        %v1356 = vpop.f32.mrb[0].mxu0
        %v1357 = vadd.f32 %v1305, %v1356
        %v1358 = vpop.f32.mrb[0].mxu0
        %v1359 = vpop.f32.mrb[0].mxu0
        %v1360 = vpop.f32.mrb[0].mxu0
        %1361 = vdwg.mxu0
        %1362 = vst.msk [vmem:[%s597] sm:$0xff] %vm629, %v1357
        %s1363 = sand.u32 %s334, 1
        %s1364 = scalar_lea.sflag [#allocation5], %s1363
        %s1365 = sand.u32 %s334, 1
        %s1366 = smul.addr %s1365, 8
        %s1367 = scalar_lea.vmem [#allocation15], %s1366
        // Predicated region
        $region97: #{tpu_custom_call.1} parent=67 // pred_check
          %p1368 = pneg %p344
        $region98: #{tpu_custom_call.1} parent=67 // pred_check_branch
          %1370 = sbr.rel (%p1368) target = $region100
        $region99: #{tpu_custom_call.1} parent=67 // pred_region
          %s1372 = ssub.s32 128, 128
          %1373 = vsyncadd %s1364, %s1372
          %s1374 = sadd.s32 %s41, %s40
          %s1375 = smul.addr %s1374, 128
          %s1376 = scalar_lea.hbm %s12, %s1375
          %s1378 = sshll.u32 %s1367, 4
          %s1379 = int_to_ptr.vmem [resolvable:$true] %s1378
          %1381 = dma.vmem_to_hbm [thread:$0]  %s1379, 128, %s1376, %s1364
        $region100: #{tpu_custom_call.1} parent=67 // pred_fallthru
          _
      $region68: #{tpu_custom_call.1} parent=5 // pred_fallthru
        _
      %p1382 = scmp.le.s32.totalorder 2, %s31
      // Predicated region
      $region101: #{tpu_custom_call.1} parent=5 // pred_check
        %p1383 = pneg %p1382
      $region102: #{tpu_custom_call.1} parent=5 // pred_check_branch
        %1385 = sbr.rel (%p1383) target = $region104
      $region103: #{tpu_custom_call.1} parent=5 // pred_region
        %s1386 = ssub.s32 %s31, 2
        // Predicated region
        $region105: #{tpu_custom_call.1} parent=103 // pred_check
          %p1387 = pneg %p350
        $region106: #{tpu_custom_call.1} parent=103 // pred_check_branch
          %1389 = sbr.rel (%p1387) target = $region108
        $region107: #{tpu_custom_call.1} parent=103 // pred_region
          %s1390 = sand.u32 %s335, 1
          %s1391 = scalar_lea.sflag [#allocation5], %s1390
          %s1392 = sand.u32 %s335, 1
          %s1393 = smul.addr %s1392, 8
          %s1394 = scalar_lea.vmem [#allocation15], %s1393
          %1395 = dma.done %s1391, 128
        $region108: #{tpu_custom_call.1} parent=103 // pred_fallthru
          _
      $region104: #{tpu_custom_call.1} parent=5 // pred_fallthru
        _
    $region6: #{tpu_custom_call.1} parent=1 // loop_footer
      %s35 = sadd.s32 1, %s31
    $region7: #{tpu_custom_call.1} parent=1 // loop_footer_branch
      %30 = sbr.rel target = $region3
    $region8: #{tpu_custom_call.1} parent=1 // loop_exit
      _
    %1396 = vsyncpa [#allocation4], 1
    %s1397 = scalar_lea.sflag [#allocation4], 1
    %1398 = vsyncpa %s1397, 1
    %1399 = vsyncpa [#allocation7], 1
    %s1400 = scalar_lea.sflag [#allocation7], 1
    %1401 = vsyncpa %s1400, 1
    %1402 = vsyncpa [#allocation10], 1
    %s1403 = scalar_lea.sflag [#allocation10], 1
    %1404 = vsyncpa %s1403, 1
    %1405 = vsyncpa [#allocation13], 1
    %1406 = vsyncpa [#allocation5], 1
    %s1407 = scalar_lea.sflag [#allocation5], 1
    %1408 = vsyncpa %s1407, 1

</llo_original>
